<compile_context>
chip_gen: v7x
topology: tpu7x:2x2x1
jax: 0.10.0
libtpu: 0.0.40
codegen_flags: <defaults>
</compile_context>

<pallas_src>
import jax
import jax.numpy as jnp
from jax.experimental import pallas as pl
from jax.experimental.pallas import tpu as pltpu


# ------------------------------ fused kernel ---------------------------------
def fused_rollout_kernel(x_ref, hc0_ref, wih_ref, whh_ref, b_ref,
                         head_w_ref, head_b_ref, mask_ref, gumbel_ref,
                         state_ref, packed_ref, carry_ref):
    t = pl.program_id(0)
    H2 = carry_ref.shape[1] // 2       # 2*H  ([actor | critic] concatenated)
    A = mask_ref.shape[1]              # action_dim
    B = x_ref.shape[0]                 # padded batch

    # initialise the resident VMEM state carry from the provided initial state
    @pl.when(t == 0)
    def _():
        carry_ref[...] = hc0_ref[...]

    h_cat = carry_ref[:, :H2]                      # (B, 2H) = [h_a | h_c]
    c_cat = carry_ref[:, H2:]                      # (B, 2H) = [c_a | c_c]

    # One MXU pass produces the gates of BOTH LSTM cells: (B, 8H),
    # gate order [i | f | o | g], each gate block = [actor cols | critic cols].
    gates = (jnp.dot(x_ref[...], wih_ref[...], preferred_element_type=jnp.float32)
             + jnp.dot(h_cat.astype(jnp.bfloat16), whh_ref[...],
                       preferred_element_type=jnp.float32)
             + b_ref[...])

    sig = jax.nn.sigmoid(gates[:, :3 * H2])        # i/f/o in one lane-aligned region
    i = sig[:, 0 * H2:1 * H2]
    f = sig[:, 1 * H2:2 * H2]
    o = sig[:, 2 * H2:3 * H2]
    g = jnp.tanh(gates[:, 3 * H2:4 * H2])
    c_new = f * c_cat + i * g                      # (B, 2H) = [c_actor | c_critic]
    h_new = o * jnp.tanh(c_new)                    # (B, 2H) = [h_actor | h_critic]

    # carry state in VMEM scratch (sub-slice stores, no concat)
    carry_ref[:, :H2] = h_new
    carry_ref[:, H2:] = c_new

    # final-state output written once, on the last timestep
    @pl.when(t == pl.num_programs(0) - 1)
    def _():
        state_ref[:, :H2] = h_new
        state_ref[:, H2:] = c_new

    # Fused policy/value head: logits from h_actor columns, value from h_critic
    # (block structure of head_w), one small matmul for both.
    hv = (jnp.dot(h_new, head_w_ref[...], preferred_element_type=jnp.float32)
          + head_b_ref[...])                       # (B, A+1)
    logits = hv[:, :A]
    value = hv[:, A:A + 1]

    mask = mask_ref[...] > 0
    neg = jnp.float32(-1e30)                       # bounded masking sentinel
    logits = jnp.where(mask, logits, neg)

    # stable softmax / log-softmax (CategoricalMasked semantics)
    m = jnp.max(logits, axis=1, keepdims=True)
    z = logits - m
    e = jnp.exp(z)
    s = jnp.sum(e, axis=1, keepdims=True)
    log_probs = z - jnp.log(s)
    probs = e / s

    # Categorical.sample() via Gumbel-max (noise supplied by the host PRNG)
    scores = jnp.where(mask, log_probs + gumbel_ref[...], neg)
    best = jnp.max(scores, axis=1, keepdims=True)
    col = jax.lax.broadcasted_iota(jnp.int32, (B, A), 1)
    action = jnp.min(jnp.where(scores == best, col, A), axis=1, keepdims=True)

    # log_prob(action) via one-hot gather
    onehot = (col == action).astype(jnp.float32)
    logp = jnp.sum(log_probs * onehot, axis=1, keepdims=True)

    # entropy (masked terms contribute 0)
    p_log_p = jnp.where(mask, log_probs * probs, 0.0)
    ent = -jnp.sum(p_log_p, axis=1, keepdims=True)

    # lane-dense packed per-step output: zero once, then sub-slice stores
    packed_ref[...] = jnp.zeros_like(packed_ref)
    packed_ref[:, :A] = probs
    packed_ref[:, A:A + 4] = jnp.concatenate(
        [action.astype(jnp.float32), logp, ent, value], axis=1)


# ----------------------------- parameter container ---------------------------
def init_params(key, feature_dim, action_dim, lstm_hidden_dim):
    """PyTorch-style uniform(-1/sqrt(H), 1/sqrt(H)) init, then fused layouts."""
    H, F, A = lstm_hidden_dim, feature_dim, action_dim
    ks = jax.random.split(key, 12)

    def u(k, shape, bound):
        return jax.random.uniform(k, shape, jnp.float32, minval=-bound, maxval=bound)

    lb = 1.0 / float(H) ** 0.5

    # per-network weights, pre-transposed to (in, 4H), PyTorch gate order i,f,g,o
    wih_a = u(ks[0], (F, 4 * H), lb)
    whh_a = u(ks[1], (H, 4 * H), lb)
    b_a = u(ks[2], (4 * H,), lb) + u(ks[3], (4 * H,), lb)     # b_ih + b_hh
    wih_c = u(ks[4], (F, 4 * H), lb)
    whh_c = u(ks[5], (H, 4 * H), lb)
    b_c = u(ks[6], (4 * H,), lb) + u(ks[7], (4 * H,), lb)
    p_w = u(ks[8], (H, A), lb)
    p_b = u(ks[9], (A,), lb)
    v_w = u(ks[10], (H, 1), lb)
    v_b = u(ks[11], (1,), lb)

    # reorder gate blocks i,f,g,o -> i,f,o,g (sigmoid gates lane-contiguous)
    perm = jnp.array([0, 1, 3, 2])

    # fused input projection (F, 8H): [i_a,i_c | f_a,f_c | o_a,o_c | g_a,g_c]
    wa = wih_a.reshape(F, 4, H)[:, perm, :]
    wc = wih_c.reshape(F, 4, H)[:, perm, :]
    wih = jnp.stack([wa, wc], axis=2).reshape(F, 8 * H)

    # fused recurrent projection: block-diagonal (2H, 8H) so h_actor only hits
    # actor gate columns and h_critic only hits critic gate columns
    ha = whh_a.reshape(H, 4, H)[:, perm, :]
    hc_ = whh_c.reshape(H, 4, H)[:, perm, :]
    zblk = jnp.zeros((H, 4, H), jnp.float32)
    top = jnp.stack([ha, zblk], axis=2).reshape(H, 8 * H)
    bot = jnp.stack([zblk, hc_], axis=2).reshape(H, 8 * H)
    whh = jnp.concatenate([top, bot], axis=0)

    ba = b_a.reshape(4, H)[perm, :]
    bc = b_c.reshape(4, H)[perm, :]
    b = jnp.stack([ba, bc], axis=1).reshape(1, 8 * H)

    # fused head: [h_a | h_c] @ head_w -> [policy logits (A) | value (1)]
    head_w = jnp.zeros((2 * H, A + 1), jnp.float32)
    head_w = head_w.at[:H, :A].set(p_w)
    head_w = head_w.at[H:, A:].set(v_w)
    head_b = jnp.concatenate([p_b, v_b]).reshape(1, A + 1)

    return {
        "wih": wih.astype(jnp.bfloat16),      # bf16 MXU operands (f32 accumulate)
        "whh": whh.astype(jnp.bfloat16),
        "b": b,                               # f32
        "head_w": head_w,                     # f32 (tiny)
        "head_b": head_b,
    }


# --------------------------------- rollout -----------------------------------
def rollout(params, obs_seq, states_lstm=None, mask_seq=None, rng=None,
            lstm_hidden_dim=32, action_dim=8):
    """Fused multi-step forward: grid=(T,), weights resident in VMEM, state
    carried in VMEM scratch.  Returns per-step outputs and the final states."""
    T, B = obs_seq.shape[0], obs_seq.shape[1]
    H, A = lstm_hidden_dim, action_dim
    H4 = 4 * H

    feats = obs_seq.reshape(T, B, -1).astype(jnp.bfloat16)   # FlattenExtractor + bf16
    F = feats.shape[-1]
    B_pad = ((B + 15) // 16) * 16                            # fill bf16 sublanes

    if states_lstm is None:
        z = jnp.zeros((B, H), jnp.float32)
        (h_a, c_a), (h_c, c_c) = (z, z), (z, z)
    else:
        (h_a, c_a), (h_c, c_c) = states_lstm
    hc0 = jnp.concatenate([h_a, h_c, c_a, c_c], axis=1)      # (B, 4H)

    if mask_seq is None:
        mask_i32 = jnp.ones((T, B, A), jnp.int32)            # all-valid == unmasked
    else:
        mask_i32 = mask_seq.astype(jnp.int32)

    if rng is None:
        rng = jax.random.PRNGKey(0)
    gumbel = jax.random.gumbel(rng, (T, B_pad, A), jnp.float32)

    def pad_b(a, axis, value=0):
        if B_pad == B:
            return a
        pad = [(0, 0)] * a.ndim
        pad[axis] = (0, B_pad - B)
        return jnp.pad(a, pad, constant_values=value)

    x_p = pad_b(feats, 1)
    hc_p = pad_b(hc0, 0)
    mask_p = pad_b(mask_i32, 1, value=1)

    out_w = 128                                              # lane-dense packed width

    state_out, packed = pl.pallas_call(
        fused_rollout_kernel,
        out_shape=(jax.ShapeDtypeStruct((B_pad, H4), jnp.float32),
                   jax.ShapeDtypeStruct((T, B_pad, out_w), jnp.float32)),
        grid_spec=pltpu.PrefetchScalarGridSpec(
            num_scalar_prefetch=0,
            grid=(T,),
            in_specs=[
                pl.BlockSpec((None, B_pad, F), lambda t: (t, 0, 0)),   # x_t
                pl.BlockSpec((B_pad, H4), lambda t: (0, 0)),           # hc0 (resident)
                pl.BlockSpec(params["wih"].shape, lambda t: (0, 0)),   # weights resident
                pl.BlockSpec(params["whh"].shape, lambda t: (0, 0)),
                pl.BlockSpec(params["b"].shape, lambda t: (0, 0)),
                pl.BlockSpec(params["head_w"].shape, lambda t: (0, 0)),
                pl.BlockSpec(params["head_b"].shape, lambda t: (0, 0)),
                pl.BlockSpec((None, B_pad, A), lambda t: (t, 0, 0)),   # mask_t
                pl.BlockSpec((None, B_pad, A), lambda t: (t, 0, 0)),   # gumbel_t
            ],
            out_specs=(
                pl.BlockSpec((B_pad, H4), lambda t: (0, 0)),           # final state
                pl.BlockSpec((None, B_pad, out_w), lambda t: (t, 0, 0)),
            ),
            scratch_shapes=[pltpu.VMEM((B_pad, H4), jnp.float32)],     # state carry
        ),
        compiler_params=pltpu.CompilerParams(
            dimension_semantics=("arbitrary",)),
    )(x_p, hc_p, params["wih"], params["whh"], params["b"],
      params["head_w"], params["head_b"], mask_p, gumbel)

    state_out = state_out[:B]
    packed = packed[:, :B]

    hidden_actor = state_out[:, 0:H]
    hidden_critic = state_out[:, H:2 * H]
    cell_actor = state_out[:, 2 * H:3 * H]
    cell_critic = state_out[:, 3 * H:4 * H]

    policy = packed[..., :A]                       # (T, B, A)
    action = packed[..., A].astype(jnp.int32)      # (T, B)
    log_prob = packed[..., A + 1]                  # (T, B)
    entropy = packed[..., A + 2]                   # (T, B)
    value = packed[..., A + 3:A + 4]               # (T, B, 1)

    return (action, policy, log_prob, entropy, value,
            [(hidden_actor, cell_actor), (hidden_critic, cell_critic)])


# --------------------------------- forward -----------------------------------
def forward(params, obs, states_lstm=None, mask=None, rng=None,
            lstm_hidden_dim=32, action_dim=8):
    """Single-step API matching the PyTorch module's forward()."""
    obs_seq = obs[None]
    mask_seq = None if mask is None else mask[None]
    action, policy, log_prob, entropy, value, states = rollout(
        params, obs_seq, states_lstm=states_lstm, mask_seq=mask_seq, rng=rng,
        lstm_hidden_dim=lstm_hidden_dim, action_dim=action_dim)
    return (action[0], policy[0], log_prob[0], entropy[0], value[0], states)


# ----------------------------------- main -------------------------------------
if __name__ == "__main__":
    B, C, Hs, Ws = 2, 4, 16, 16
    T = 8
    feature_dim = C * Hs * Ws            # 1024
    action_dim = 8
    lstm_hidden_dim = 32

    key = jax.random.PRNGKey(0)
    k_obs, k_params, k_s1, k_s2, k_roll, k_seq = jax.random.split(key, 6)
    obs = jax.random.normal(k_obs, (B, C, Hs, Ws), jnp.float32)
    params = init_params(k_params, feature_dim, action_dim, lstm_hidden_dim)

    # optional action mask (last action masked out for row 1)
    mask = jnp.ones((B, action_dim), jnp.bool_).at[1, -1].set(False)

    # --- single-step API (original module semantics) ---
    action, policy, log_prob, entropy, value, states = forward(
        params, obs, states_lstm=None, mask=mask, rng=k_s1,
        lstm_hidden_dim=lstm_hidden_dim, action_dim=action_dim)

    action2, policy2, log_prob2, entropy2, value2, states2 = forward(
        params, obs, states_lstm=states, mask=mask, rng=k_s2,
        lstm_hidden_dim=lstm_hidden_dim, action_dim=action_dim)

    # --- fused multi-step rollout (grid=(T,), weights resident in VMEM) ---
    obs_seq = jax.random.normal(k_seq, (T, B, C, Hs, Ws), jnp.float32)
    mask_seq = jnp.broadcast_to(mask, (T, B, action_dim))
    ra, rp, rlp, rent, rv, rstates = rollout(
        params, obs_seq, states_lstm=None, mask_seq=mask_seq, rng=k_roll,
        lstm_hidden_dim=lstm_hidden_dim, action_dim=action_dim)

    jax.block_until_ready((action, policy, log_prob, entropy, value,
                           states[0][0], states[0][1], states[1][0], states[1][1],
                           action2, policy2, log_prob2, entropy2, value2,
                           ra, rp, rlp, rent, rv, rstates[0][0], rstates[1][1]))

    assert action.shape == (B,)
    assert policy.shape == (B, action_dim)
    assert log_prob.shape == (B,)
    assert entropy.shape == (B,)
    assert value.shape == (B, 1)
    assert states[0][0].shape == (B, lstm_hidden_dim)
    assert states[1][1].shape == (B, lstm_hidden_dim)
    assert ra.shape == (T, B)
    assert rp.shape == (T, B, action_dim)
    assert rv.shape == (T, B, 1)
    assert rstates[0][0].shape == (B, lstm_hidden_dim)

    # probabilities normalize and masking is respected
    assert float(jnp.abs(jnp.sum(policy, axis=1) - 1.0).max()) < 1e-5
    assert float(jnp.abs(jnp.sum(rp, axis=-1) - 1.0).max()) < 1e-5
    assert float(policy[1, -1]) == 0.0
    assert float(jnp.abs(rp[:, 1, -1]).max()) == 0.0
    assert int(action[1]) != action_dim - 1
    assert not bool(jnp.any(ra[:, 1] == action_dim - 1))

    print("KERNEL_OK")
</pallas_src>

<mosaic_0001>
module attributes {stable_mosaic.version = 11 : i64} {
  func.func @fused_rollout_kernel(%arg0: i32, %arg1: memref<1x16x1024xbf16, #tpu.memory_space<vmem>>, %arg2: memref<16x128xf32, #tpu.memory_space<vmem>>, %arg3: memref<1024x256xbf16, #tpu.memory_space<vmem>>, %arg4: memref<64x256xbf16, #tpu.memory_space<vmem>>, %arg5: memref<1x256xf32, #tpu.memory_space<vmem>>, %arg6: memref<64x9xf32, #tpu.memory_space<vmem>>, %arg7: memref<1x9xf32, #tpu.memory_space<vmem>>, %arg8: memref<1x16x8xi32, #tpu.memory_space<vmem>>, %arg9: memref<1x16x8xf32, #tpu.memory_space<vmem>>, %arg10: memref<16x128xf32, #tpu.memory_space<vmem>>, %arg11: memref<1x16x128xf32, #tpu.memory_space<vmem>>, %arg12: memref<16x128xf32, #tpu.memory_space<vmem>>) attributes {dimension_semantics = [#tpu.dimension_semantics<arbitrary>], iteration_bounds = array<i64: 1>, scalar_prefetch = 0 : i64, scratch_operands = 1 : i64, tpu.core_type = #tpu.core_type<tc>, window_params = [{transform_indices = @transform_0, window_bounds = array<i64: 1, 16, 1024>}, {pipeline_mode = #tpu.pipeline_mode<synchronous>, transform_indices = @transform_1, window_bounds = array<i64: 16, 128>}, {pipeline_mode = #tpu.pipeline_mode<synchronous>, transform_indices = @transform_2, window_bounds = array<i64: 1024, 256>}, {pipeline_mode = #tpu.pipeline_mode<synchronous>, transform_indices = @transform_3, window_bounds = array<i64: 64, 256>}, {pipeline_mode = #tpu.pipeline_mode<synchronous>, transform_indices = @transform_4, window_bounds = array<i64: 1, 256>}, {pipeline_mode = #tpu.pipeline_mode<synchronous>, transform_indices = @transform_5, window_bounds = array<i64: 64, 9>}, {pipeline_mode = #tpu.pipeline_mode<synchronous>, transform_indices = @transform_6, window_bounds = array<i64: 1, 9>}, {transform_indices = @transform_7, window_bounds = array<i64: 1, 16, 8>}, {transform_indices = @transform_8, window_bounds = array<i64: 1, 16, 8>}, {pipeline_mode = #tpu.pipeline_mode<synchronous>, transform_indices = @transform_9, window_bounds = array<i64: 16, 128>}, {transform_indices = @transform_10, window_bounds = array<i64: 1, 16, 128>}]} {
    %c0_i32 = arith.constant 0 : i32
    %0 = arith.cmpi eq, %arg0, %c0_i32 : i32
    %1 = arith.extui %0 : i1 to i32
    %c0_i32_0 = arith.constant 0 : i32
    %2 = arith.cmpi ne, %1, %c0_i32_0 : i32
    scf.if %2 {
      %c0_51 = arith.constant 0 : index
      %c0_52 = arith.constant 0 : index
      %102 = vector.load %arg2[%c0_51, %c0_52] : memref<16x128xf32, #tpu.memory_space<vmem>>, vector<16x128xf32>
      %c0_53 = arith.constant 0 : index
      %c0_54 = arith.constant 0 : index
      %103 = vector.load %arg12[%c0_53, %c0_54] : memref<16x128xf32, #tpu.memory_space<vmem>>, vector<16x128xf32>
      tpu.vector_store %arg12[%c0_53, %c0_54], %102 {strides = array<i32>} : memref<16x128xf32, #tpu.memory_space<vmem>>, vector<16x128xf32>,
    } else {
    }
    %c0 = arith.constant 0 : index
    %c0_1 = arith.constant 0 : index
    %3 = vector.load %arg12[%c0, %c0_1] : memref<16x128xf32, #tpu.memory_space<vmem>>, vector<16x64xf32>
    %c0_2 = arith.constant 0 : index
    %c64 = arith.constant 64 : index
    %4 = vector.load %arg12[%c0_2, %c64] : memref<16x128xf32, #tpu.memory_space<vmem>>, vector<16x64xf32>
    %c0_3 = arith.constant 0 : index
    %c0_4 = arith.constant 0 : index
    %c0_5 = arith.constant 0 : index
    %5 = vector.load %arg1[%c0_3, %c0_4, %c0_5] : memref<1x16x1024xbf16, #tpu.memory_space<vmem>>, vector<1x16x1024xbf16>
    %6 = vector.shape_cast %5 : vector<1x16x1024xbf16> to vector<16x1024xbf16>
    %c0_6 = arith.constant 0 : index
    %c0_7 = arith.constant 0 : index
    %7 = vector.load %arg3[%c0_6, %c0_7] : memref<1024x256xbf16, #tpu.memory_space<vmem>>, vector<1024x256xbf16>
    %cst = arith.constant dense<0.000000e+00> : vector<16x256xf32>
    %8 = tpu.matmul %6, %7, %cst {dimension_numbers = #tpu.dot_dimension_numbers<[1], [0], [0], [1], [0, 0, 1, 1], [], []>} : vector<16x1024xbf16>, vector<1024x256xbf16>, vector<16x256xf32> -> vector<16x256xf32>
    %9 = arith.truncf %3 : vector<16x64xf32> to vector<16x64xbf16>
    %c0_8 = arith.constant 0 : index
    %c0_9 = arith.constant 0 : index
    %10 = vector.load %arg4[%c0_8, %c0_9] : memref<64x256xbf16, #tpu.memory_space<vmem>>, vector<64x256xbf16>
    %cst_10 = arith.constant dense<0.000000e+00> : vector<16x256xf32>
    %11 = tpu.matmul %9, %10, %cst_10 {dimension_numbers = #tpu.dot_dimension_numbers<[1], [0], [0], [1], [0, 0, 1, 1], [], []>} : vector<16x64xbf16>, vector<64x256xbf16>, vector<16x256xf32> -> vector<16x256xf32>
    %12 = arith.addf %8, %11 : vector<16x256xf32>
    %c0_11 = arith.constant 0 : index
    %c0_12 = arith.constant 0 : index
    %13 = vector.load %arg5[%c0_11, %c0_12] : memref<1x256xf32, #tpu.memory_space<vmem>>, vector<1x256xf32>
    %14 = vector.broadcast %13 : vector<1x256xf32> to vector<16x256xf32>
    %15 = arith.addf %12, %14 : vector<16x256xf32>
    %16 = vector.extract_strided_slice %15 {offsets = [0, 0], sizes = [16, 192], strides = [1, 1]} : vector<16x256xf32> to vector<16x192xf32>
    %17 = arith.negf %16 : vector<16x192xf32>
    %18 = math.exp %17 : vector<16x192xf32>
    %cst_13 = arith.constant 1.000000e+00 : f32
    %19 = vector.broadcast %cst_13 : f32 to vector<16x192xf32>
    %20 = arith.addf %19, %18 : vector<16x192xf32>
    %21 = arith.divf %19, %20 : vector<16x192xf32>
    %22 = vector.extract_strided_slice %21 {offsets = [0, 0], sizes = [16, 64], strides = [1, 1]} : vector<16x192xf32> to vector<16x64xf32>
    %23 = vector.extract_strided_slice %21 {offsets = [0, 64], sizes = [16, 64], strides = [1, 1]} : vector<16x192xf32> to vector<16x64xf32>
    %24 = vector.extract_strided_slice %21 {offsets = [0, 128], sizes = [16, 64], strides = [1, 1]} : vector<16x192xf32> to vector<16x64xf32>
    %25 = vector.extract_strided_slice %15 {offsets = [0, 192], sizes = [16, 64], strides = [1, 1]} : vector<16x256xf32> to vector<16x64xf32>
    %26 = math.tanh %25 : vector<16x64xf32>
    %27 = arith.mulf %23, %4 : vector<16x64xf32>
    %28 = arith.mulf %22, %26 : vector<16x64xf32>
    %29 = arith.addf %27, %28 : vector<16x64xf32>
    %30 = math.tanh %29 : vector<16x64xf32>
    %31 = arith.mulf %24, %30 : vector<16x64xf32>
    %c0_14 = arith.constant 0 : index
    %c0_15 = arith.constant 0 : index
    %32 = vector.load %arg12[%c0_14, %c0_15] : memref<16x128xf32, #tpu.memory_space<vmem>>, vector<16x64xf32>
    tpu.vector_store %arg12[%c0_14, %c0_15], %31 {strides = array<i32>} : memref<16x128xf32, #tpu.memory_space<vmem>>, vector<16x64xf32>,
    %c0_16 = arith.constant 0 : index
    %c64_17 = arith.constant 64 : index
    %33 = vector.load %arg12[%c0_16, %c64_17] : memref<16x128xf32, #tpu.memory_space<vmem>>, vector<16x64xf32>
    tpu.vector_store %arg12[%c0_16, %c64_17], %29 {strides = array<i32>} : memref<16x128xf32, #tpu.memory_space<vmem>>, vector<16x64xf32>,
    %c0_i32_18 = arith.constant 0 : i32
    %34 = arith.cmpi eq, %arg0, %c0_i32_18 : i32
    %35 = arith.extui %34 : i1 to i32
    %c0_i32_19 = arith.constant 0 : i32
    %36 = arith.cmpi ne, %35, %c0_i32_19 : i32
    scf.if %36 {
      %c0_51 = arith.constant 0 : index
      %c0_52 = arith.constant 0 : index
      %102 = vector.load %arg10[%c0_51, %c0_52] : memref<16x128xf32, #tpu.memory_space<vmem>>, vector<16x64xf32>
      tpu.vector_store %arg10[%c0_51, %c0_52], %31 {strides = array<i32>} : memref<16x128xf32, #tpu.memory_space<vmem>>, vector<16x64xf32>,
      %c0_53 = arith.constant 0 : index
      %c64_54 = arith.constant 64 : index
      %103 = vector.load %arg10[%c0_53, %c64_54] : memref<16x128xf32, #tpu.memory_space<vmem>>, vector<16x64xf32>
      tpu.vector_store %arg10[%c0_53, %c64_54], %29 {strides = array<i32>} : memref<16x128xf32, #tpu.memory_space<vmem>>, vector<16x64xf32>,
    } else {
    }
    %c0_20 = arith.constant 0 : index
    %c0_21 = arith.constant 0 : index
    %37 = vector.load %arg6[%c0_20, %c0_21] : memref<64x9xf32, #tpu.memory_space<vmem>>, vector<64x9xf32>
    %cst_22 = arith.constant dense<0.000000e+00> : vector<16x9xf32>
    %38 = tpu.matmul %31, %37, %cst_22 {dimension_numbers = #tpu.dot_dimension_numbers<[1], [0], [0], [1], [0, 0, 1, 1], [], []>} : vector<16x64xf32>, vector<64x9xf32>, vector<16x9xf32> -> vector<16x9xf32>
    %c0_23 = arith.constant 0 : index
    %c0_24 = arith.constant 0 : index
    %39 = vector.load %arg7[%c0_23, %c0_24] : memref<1x9xf32, #tpu.memory_space<vmem>>, vector<1x9xf32>
    %40 = vector.broadcast %39 : vector<1x9xf32> to vector<16x9xf32>
    %41 = arith.addf %38, %40 : vector<16x9xf32>
    %42 = vector.extract_strided_slice %41 {offsets = [0, 0], sizes = [16, 8], strides = [1, 1]} : vector<16x9xf32> to vector<16x8xf32>
    %43 = vector.extract_strided_slice %41 {offsets = [0, 8], sizes = [16, 1], strides = [1, 1]} : vector<16x9xf32> to vector<16x1xf32>
    %c0_25 = arith.constant 0 : index
    %c0_26 = arith.constant 0 : index
    %c0_27 = arith.constant 0 : index
    %44 = vector.load %arg8[%c0_25, %c0_26, %c0_27] : memref<1x16x8xi32, #tpu.memory_space<vmem>>, vector<1x16x8xi32>
    %45 = vector.shape_cast %44 : vector<1x16x8xi32> to vector<16x8xi32>
    %c0_i32_28 = arith.constant 0 : i32
    %46 = vector.broadcast %c0_i32_28 : i32 to vector<16x8xi32>
    %47 = arith.cmpi sgt, %45, %46 : vector<16x8xi32>
    %cst_29 = arith.constant -1.000000e+30 : f32
    %48 = vector.broadcast %cst_29 : f32 to vector<16x8xf32>
    %49 = arith.select %47, %42, %48 : vector<16x8xi1>, vector<16x8xf32>
    %cst_30 = arith.constant dense<0xFF800000> : vector<16xf32>
    %50 = vector.multi_reduction <maximumf>, %49, %cst_30 [1] : vector<16x8xf32> to vector<16xf32>
    %51 = vector.shape_cast %50 : vector<16xf32> to vector<16x1xf32>
    %52 = vector.broadcast %51 : vector<16x1xf32> to vector<16x8xf32>
    %53 = arith.subf %49, %52 : vector<16x8xf32>
    %54 = math.exp %53 : vector<16x8xf32>
    %cst_31 = arith.constant dense<0.000000e+00> : vector<16xf32>
    %55 = vector.multi_reduction <add>, %54, %cst_31 [1] : vector<16x8xf32> to vector<16xf32>
    %56 = vector.shape_cast %55 : vector<16xf32> to vector<16x1xf32>
    %57 = math.log %56 : vector<16x1xf32>
    %58 = vector.broadcast %57 : vector<16x1xf32> to vector<16x8xf32>
    %59 = arith.subf %53, %58 : vector<16x8xf32>
    %60 = vector.broadcast %56 : vector<16x1xf32> to vector<16x8xf32>
    %61 = arith.divf %54, %60 : vector<16x8xf32>
    %c0_32 = arith.constant 0 : index
    %c0_33 = arith.constant 0 : index
    %c0_34 = arith.constant 0 : index
    %62 = vector.load %arg9[%c0_32, %c0_33, %c0_34] : memref<1x16x8xf32, #tpu.memory_space<vmem>>, vector<1x16x8xf32>
    %63 = vector.shape_cast %62 : vector<1x16x8xf32> to vector<16x8xf32>
    %64 = arith.addf %59, %63 : vector<16x8xf32>
    %cst_35 = arith.constant -1.000000e+30 : f32
    %65 = vector.broadcast %cst_35 : f32 to vector<16x8xf32>
    %66 = arith.select %47, %64, %65 : vector<16x8xi1>, vector<16x8xf32>
    %cst_36 = arith.constant dense<0xFF800000> : vector<16xf32>
    %67 = vector.multi_reduction <maximumf>, %66, %cst_36 [1] : vector<16x8xf32> to vector<16xf32>
    %68 = vector.shape_cast %67 : vector<16xf32> to vector<16x1xf32>
    %69 = tpu.iota {dimensions = array<i32: 1>} : vector<16x8xi32>
    %70 = vector.broadcast %68 : vector<16x1xf32> to vector<16x8xf32>
    %71 = arith.cmpf oeq, %66, %70 : vector<16x8xf32>
    %c8_i32 = arith.constant 8 : i32
    %72 = vector.broadcast %c8_i32 : i32 to vector<16x8xi32>
    %73 = arith.select %71, %69, %72 : vector<16x8xi1>, vector<16x8xi32>
    %cst_37 = arith.constant dense<2147483647> : vector<16xi32>
    %74 = vector.multi_reduction <minsi>, %73, %cst_37 [1] : vector<16x8xi32> to vector<16xi32>
    %75 = vector.shape_cast %74 : vector<16xi32> to vector<16x1xi32>
    %76 = vector.broadcast %75 : vector<16x1xi32> to vector<16x8xi32>
    %77 = arith.cmpi eq, %69, %76 : vector<16x8xi32>
    %78 = arith.extui %77 : vector<16x8xi1> to vector<16x8xi32>
    %79 = arith.sitofp %78 : vector<16x8xi32> to vector<16x8xf32>
    %80 = arith.mulf %59, %79 : vector<16x8xf32>
    %cst_38 = arith.constant dense<0.000000e+00> : vector<16xf32>
    %81 = vector.multi_reduction <add>, %80, %cst_38 [1] : vector<16x8xf32> to vector<16xf32>
    %82 = vector.shape_cast %81 : vector<16xf32> to vector<16x1xf32>
    %83 = arith.mulf %59, %61 : vector<16x8xf32>
    %cst_39 = arith.constant 0.000000e+00 : f32
    %84 = vector.broadcast %cst_39 : f32 to vector<16x8xf32>
    %85 = arith.select %47, %83, %84 : vector<16x8xi1>, vector<16x8xf32>
    %cst_40 = arith.constant dense<0.000000e+00> : vector<16xf32>
    %86 = vector.multi_reduction <add>, %85, %cst_40 [1] : vector<16x8xf32> to vector<16xf32>
    %87 = vector.shape_cast %86 : vector<16xf32> to vector<16x1xf32>
    %cst_41 = arith.constant 0.000000e+00 : f32
    %88 = vector.broadcast %cst_41 : f32 to vector<16x1xf32>
    %89 = arith.subf %88, %87 : vector<16x1xf32>
    %cst_42 = arith.constant 0.000000e+00 : f32
    %90 = vector.broadcast %cst_42 : f32 to vector<16x128xf32>
    %c0_43 = arith.constant 0 : index
    %c0_44 = arith.constant 0 : index
    %c0_45 = arith.constant 0 : index
    %91 = vector.load %arg11[%c0_43, %c0_44, %c0_45] : memref<1x16x128xf32, #tpu.memory_space<vmem>>, vector<1x16x128xf32>
    %92 = vector.shape_cast %91 : vector<1x16x128xf32> to vector<16x128xf32>
    %93 = vector.shape_cast %90 : vector<16x128xf32> to vector<1x16x128xf32>
    tpu.vector_store %arg11[%c0_43, %c0_44, %c0_45], %93 {strides = array<i32>} : memref<1x16x128xf32, #tpu.memory_space<vmem>>, vector<1x16x128xf32>,
    %c0_46 = arith.constant 0 : index
    %c0_47 = arith.constant 0 : index
    %c0_48 = arith.constant 0 : index
    %94 = vector.load %arg11[%c0_46, %c0_47, %c0_48] : memref<1x16x128xf32, #tpu.memory_space<vmem>>, vector<1x16x8xf32>
    %95 = vector.shape_cast %94 : vector<1x16x8xf32> to vector<16x8xf32>
    %96 = vector.shape_cast %61 : vector<16x8xf32> to vector<1x16x8xf32>
    tpu.vector_store %arg11[%c0_46, %c0_47, %c0_48], %96 {strides = array<i32>} : memref<1x16x128xf32, #tpu.memory_space<vmem>>, vector<1x16x8xf32>,
    %97 = arith.sitofp %75 : vector<16x1xi32> to vector<16x1xf32>
    %98 = tpu.concatenate %97, %82, %89, %43 in 1 : vector<16x1xf32>, vector<16x1xf32>, vector<16x1xf32>, vector<16x1xf32> -> vector<16x4xf32>
    %c0_49 = arith.constant 0 : index
    %c0_50 = arith.constant 0 : index
    %c8 = arith.constant 8 : index
    %99 = vector.load %arg11[%c0_49, %c0_50, %c8] : memref<1x16x128xf32, #tpu.memory_space<vmem>>, vector<1x16x4xf32>
    %100 = vector.shape_cast %99 : vector<1x16x4xf32> to vector<16x4xf32>
    %101 = vector.shape_cast %98 : vector<16x4xf32> to vector<1x16x4xf32>
    tpu.vector_store %arg11[%c0_49, %c0_50, %c8], %101 {strides = array<i32>} : memref<1x16x128xf32, #tpu.memory_space<vmem>>, vector<1x16x4xf32>,
    return
  }
  func.func @transform_0(%arg0: i32) -> (i32, i32, i32) {
    %c0_i32 = arith.constant 0 : i32
    %c0_i32_0 = arith.constant 0 : i32
    %c0_i32_1 = arith.constant 0 : i32
    return %arg0, %c0_i32, %c0_i32_0 : i32, i32, i32
  }
  func.func @transform_1(%arg0: i32) -> (i32, i32) {
    %c0_i32 = arith.constant 0 : i32
    %c0_i32_0 = arith.constant 0 : i32
    %c0_i32_1 = arith.constant 0 : i32
    return %c0_i32, %c0_i32_0 : i32, i32
  }
  func.func @transform_2(%arg0: i32) -> (i32, i32) {
    %c0_i32 = arith.constant 0 : i32
    %c0_i32_0 = arith.constant 0 : i32
    %c0_i32_1 = arith.constant 0 : i32
    return %c0_i32, %c0_i32_0 : i32, i32
  }
  func.func @transform_3(%arg0: i32) -> (i32, i32) {
    %c0_i32 = arith.constant 0 : i32
    %c0_i32_0 = arith.constant 0 : i32
    %c0_i32_1 = arith.constant 0 : i32
    return %c0_i32, %c0_i32_0 : i32, i32
  }
  func.func @transform_4(%arg0: i32) -> (i32, i32) {
    %c0_i32 = arith.constant 0 : i32
    %c0_i32_0 = arith.constant 0 : i32
    %c0_i32_1 = arith.constant 0 : i32
    return %c0_i32, %c0_i32_0 : i32, i32
  }
  func.func @transform_5(%arg0: i32) -> (i32, i32) {
    %c0_i32 = arith.constant 0 : i32
    %c0_i32_0 = arith.constant 0 : i32
    %c0_i32_1 = arith.constant 0 : i32
    return %c0_i32, %c0_i32_0 : i32, i32
  }
  func.func @transform_6(%arg0: i32) -> (i32, i32) {
    %c0_i32 = arith.constant 0 : i32
    %c0_i32_0 = arith.constant 0 : i32
    %c0_i32_1 = arith.constant 0 : i32
    return %c0_i32, %c0_i32_0 : i32, i32
  }
  func.func @transform_7(%arg0: i32) -> (i32, i32, i32) {
    %c0_i32 = arith.constant 0 : i32
    %c0_i32_0 = arith.constant 0 : i32
    %c0_i32_1 = arith.constant 0 : i32
    return %arg0, %c0_i32, %c0_i32_0 : i32, i32, i32
  }
  func.func @transform_8(%arg0: i32) -> (i32, i32, i32) {
    %c0_i32 = arith.constant 0 : i32
    %c0_i32_0 = arith.constant 0 : i32
    %c0_i32_1 = arith.constant 0 : i32
    return %arg0, %c0_i32, %c0_i32_0 : i32, i32, i32
  }
  func.func @transform_9(%arg0: i32) -> (i32, i32) {
    %c0_i32 = arith.constant 0 : i32
    %c0_i32_0 = arith.constant 0 : i32
    %c0_i32_1 = arith.constant 0 : i32
    return %c0_i32, %c0_i32_0 : i32, i32
  }
  func.func @transform_10(%arg0: i32) -> (i32, i32, i32) {
    %c0_i32 = arith.constant 0 : i32
    %c0_i32_0 = arith.constant 0 : i32
    %c0_i32_1 = arith.constant 0 : i32
    return %arg0, %c0_i32, %c0_i32_0 : i32, i32, i32
  }
}

</mosaic_0001>

<llo_original>
// kernel: tpu_custom_call.1
$region0: #{tpu_custom_call.1}
  #allocation0 [shape = 'u32[]', space=smem, size = 0x4, offset = 0x4, fixed_abs, tag = 'smem constant byte address 0x4 - core index']
  #allocation1 [shape = 'u32[144,128]{1,0:T(1,128)}', space=vmem, size = 0x12000, scoped, tag = 'internal scratch']
  #allocation2 [shape = 'f32[16,128]{1,0:T(8,128)}', space=vmem, size = 0x2000, scoped, tag = 'scratch operand']
  %s0 = inlined_call_operand.vmem [shape: bf16[1,16,1024], index: 0, kind: input, shape index: {}]
  %s1 = inlined_call_operand.hbm [shape: f32[16,128], index: 1, kind: input, shape index: {}]
  %s2 = inlined_call_operand.hbm [shape: bf16[1024,256], index: 2, kind: input, shape index: {}]
  %s3 = inlined_call_operand.vmem [shape: bf16[64,256], index: 3, kind: input, shape index: {}]
  %s4 = inlined_call_operand.vmem [shape: f32[1,256], index: 4, kind: input, shape index: {}]
  %s5 = inlined_call_operand.vmem [shape: f32[64,9], index: 5, kind: input, shape index: {}]
  %s6 = inlined_call_operand.hbm [shape: f32[1,9], index: 6, kind: input, shape index: {}]
  %s7 = inlined_call_operand.vmem [shape: s32[1,16,8], index: 7, kind: input, shape index: {}]
  %s8 = inlined_call_operand.vmem [shape: f32[1,16,8], index: 8, kind: input, shape index: {}]
  %s9 = inlined_call_operand.hbm [shape: f32[16,128], index: 9, kind: output, shape index: {0}]
  %s10 = inlined_call_operand.hbm [shape: f32[1,16,128], index: 10, kind: output, shape index: {1}]
  %11 = xla_tuple %s9, %s10
  %s12 = sld [smem:[#allocation0]]
  $region74: #{tpu_custom_call.1} parent=0
    _
  %s14 = ssub.s32 1, %s12
  %s15 = scalar_select 0, %s14, %s12
  $region1: #{tpu_custom_call.1} parent=0
    #allocation3 [shape = 'u8[8192]{0}', space=vmem, size = 0x2000, scoped, tag = 'input window, operand 1, single buffered']
    #allocation4 [shape = 's32[1]{0}', space=sflag, size = 0x4, scoped, tag = 'scoped memory for tpu_custom_call.1']
    #allocation5 [shape = 's32[1]{0}', space=sflag, size = 0x4, scoped, tag = 'scoped memory for tpu_custom_call.1']
    #allocation6 [shape = 'u8[524288]{0}', space=vmem, size = 0x80000, scoped, tag = 'input window, operand 2, single buffered']
    #allocation7 [shape = 's32[1]{0}', space=sflag, size = 0x4, scoped, tag = 'scoped memory for tpu_custom_call.1']
    #allocation8 [shape = 'u8[512]{0}', space=vmem, size = 0x400, scoped, tag = 'input window, operand 6, single buffered']
    #allocation9 [shape = 'u8[8192]{0}', space=vmem, size = 0x2000, scoped, tag = 'output window, operand 0, single buffered']
    #allocation10 [shape = 'u8[8192]{0}', space=vmem, size = 0x2000, scoped, tag = 'output window, operand 1, single buffered']
    #allocation11 [shape = 's32[1]{0}', space=sflag, size = 0x4, scoped, tag = 'scoped memory for tpu_custom_call.1']
    %16 = vsyncpa [#allocation4], 0
    %17 = vsyncpa [#allocation7], 0
    %18 = vsyncpa [#allocation5], 0
    %19 = vsyncpa [#allocation11], 0
    // Predicated region
    $region2: #{tpu_custom_call.1} parent=1 // pred_check
      _
    $region3: #{tpu_custom_call.1} parent=1 // pred_check_branch
      %21 = sbr.rel (0) target = $region5
    $region4: #{tpu_custom_call.1} parent=1 // pred_region
      _
    $region5: #{tpu_custom_call.1} parent=1 // pred_fallthru
      _
    // Predicated region
    $region6: #{tpu_custom_call.1} parent=1 // pred_check
      _
    $region7: #{tpu_custom_call.1} parent=1 // pred_check_branch
      %23 = sbr.rel (0) target = $region9
    $region8: #{tpu_custom_call.1} parent=1 // pred_region
      %s25 = ssub.s32 256, 256
      %26 = vsyncadd [#allocation4], %s25
      %s27 = sshll.u32 [#allocation3], 4
      %s28 = int_to_ptr.vmem [resolvable:$true] %s27
      %33 = dma.hbm_to_vmem [thread:$0]  %s1, 256, %s28, [#allocation4], 128, 128, 8
    $region9: #{tpu_custom_call.1} parent=1 // pred_fallthru
      _
    // Predicated region
    $region10: #{tpu_custom_call.1} parent=1 // pred_check
      _
    $region11: #{tpu_custom_call.1} parent=1 // pred_check_branch
      %35 = sbr.rel (0) target = $region13
    $region12: #{tpu_custom_call.1} parent=1 // pred_region
      %s37 = ssub.s32 16384, 16384
      %38 = vsyncadd [#allocation7], %s37
      %s39 = sshll.u32 [#allocation6], 4
      %s40 = int_to_ptr.vmem [resolvable:$true] %s39
      %45 = dma.hbm_to_vmem [thread:$0]  %s2, 16384, %s40, [#allocation7], 128, 128, 8
    $region13: #{tpu_custom_call.1} parent=1 // pred_fallthru
      _
    // Predicated region
    $region14: #{tpu_custom_call.1} parent=1 // pred_check
      _
    $region15: #{tpu_custom_call.1} parent=1 // pred_check_branch
      %47 = sbr.rel (0) target = $region17
    $region16: #{tpu_custom_call.1} parent=1 // pred_region
      _
    $region17: #{tpu_custom_call.1} parent=1 // pred_fallthru
      _
    // Predicated region
    $region18: #{tpu_custom_call.1} parent=1 // pred_check
      _
    $region19: #{tpu_custom_call.1} parent=1 // pred_check_branch
      %49 = sbr.rel (0) target = $region21
    $region20: #{tpu_custom_call.1} parent=1 // pred_region
      _
    $region21: #{tpu_custom_call.1} parent=1 // pred_fallthru
      _
    // Predicated region
    $region22: #{tpu_custom_call.1} parent=1 // pred_check
      _
    $region23: #{tpu_custom_call.1} parent=1 // pred_check_branch
      %51 = sbr.rel (0) target = $region25
    $region24: #{tpu_custom_call.1} parent=1 // pred_region
      _
    $region25: #{tpu_custom_call.1} parent=1 // pred_fallthru
      _
    // Predicated region
    $region26: #{tpu_custom_call.1} parent=1 // pred_check
      _
    $region27: #{tpu_custom_call.1} parent=1 // pred_check_branch
      %53 = sbr.rel (0) target = $region29
    $region28: #{tpu_custom_call.1} parent=1 // pred_region
      %s55 = ssub.s32 16, 16
      %56 = vsyncadd [#allocation7], %s55
      %s58 = sshll.u32 [#allocation8], 4
      %s59 = int_to_ptr.vmem [resolvable:$true] %s58
      %61 = dma.hbm_to_vmem [thread:$0]  %s6, 16, %s59, [#allocation7]
    $region29: #{tpu_custom_call.1} parent=1 // pred_fallthru
      _
    // Predicated region
    $region30: #{tpu_custom_call.1} parent=1 // pred_check
      _
    $region31: #{tpu_custom_call.1} parent=1 // pred_check_branch
      %63 = sbr.rel (0) target = $region33
    $region32: #{tpu_custom_call.1} parent=1 // pred_region
      _
    $region33: #{tpu_custom_call.1} parent=1 // pred_fallthru
      _
    // Predicated region
    $region34: #{tpu_custom_call.1} parent=1 // pred_check
      _
    $region35: #{tpu_custom_call.1} parent=1 // pred_check_branch
      %65 = sbr.rel (0) target = $region37
    $region36: #{tpu_custom_call.1} parent=1 // pred_region
      _
    $region37: #{tpu_custom_call.1} parent=1 // pred_fallthru
      _
    // Predicated region
    $region38: #{tpu_custom_call.1} parent=1 // pred_check
      _
    $region39: #{tpu_custom_call.1} parent=1 // pred_check_branch
      %67 = sbr.rel (0) target = $region41
    $region40: #{tpu_custom_call.1} parent=1 // pred_region
      %68 = dma.done [#allocation4], 256
    $region41: #{tpu_custom_call.1} parent=1 // pred_fallthru
      _
    // Predicated region
    $region42: #{tpu_custom_call.1} parent=1 // pred_check
      _
    $region43: #{tpu_custom_call.1} parent=1 // pred_check_branch
      %70 = sbr.rel (0) target = $region45
    $region44: #{tpu_custom_call.1} parent=1 // pred_region
      %71 = dma.done [#allocation7], 16384
    $region45: #{tpu_custom_call.1} parent=1 // pred_fallthru
      _
    // Predicated region
    $region46: #{tpu_custom_call.1} parent=1 // pred_check
      _
    $region47: #{tpu_custom_call.1} parent=1 // pred_check_branch
      %73 = sbr.rel (0) target = $region49
    $region48: #{tpu_custom_call.1} parent=1 // pred_region
      %74 = dma.done [#allocation7], 16
    $region49: #{tpu_custom_call.1} parent=1 // pred_fallthru
      _
    %p76 = scmp.eq.s32.totalorder 0, 0
    // Predicated region
    $region50: #{tpu_custom_call.1} parent=1 // pred_check
      %p77 = pneg %p76
    $region51: #{tpu_custom_call.1} parent=1 // pred_check_branch
      %79 = sbr.rel (%p77) target = $region53
    $region52: #{tpu_custom_call.1} parent=1 // pred_region
      %v80 = vld [vmem:[#allocation3] sm:$0xff]
      %v81 = vld [vmem:[#allocation3 + $0x8] sm:$0xff]
      %82 = vst [vmem:[#allocation2] sm:$0xff] %v80
      %83 = vst [vmem:[#allocation2 + $0x8] sm:$0xff] %v81
    $region53: #{tpu_custom_call.1} parent=1 // pred_fallthru
      _
    %v84 = vld [vmem:[#allocation2] sm:$0xff]
    %v85 = vld [vmem:[#allocation2 + $0x8] sm:$0xff]
    %v86 = vld [vmem:[%s0] sm:$0xff]
    %v87 = vld [vmem:[%s0 + $0x8] sm:$0xff]
    %v88 = vld [vmem:[%s0 + $0x10] sm:$0xff]
    %v89 = vld [vmem:[%s0 + $0x18] sm:$0xff]
    %v90 = vld [vmem:[%s0 + $0x20] sm:$0xff]
    %v91 = vld [vmem:[%s0 + $0x28] sm:$0xff]
    %v92 = vld [vmem:[%s0 + $0x30] sm:$0xff]
    %v93 = vld [vmem:[%s0 + $0x38] sm:$0xff]
    %v94 = vld [vmem:[#allocation6] sm:$0xff]
    %v95 = vld [vmem:[#allocation6 + $0x8] sm:$0xff]
    %v96 = vld [vmem:[#allocation6 + $0x10] sm:$0xff]
    %v97 = vld [vmem:[#allocation6 + $0x18] sm:$0xff]
    %v98 = vld [vmem:[#allocation6 + $0x20] sm:$0xff]
    %v99 = vld [vmem:[#allocation6 + $0x28] sm:$0xff]
    %v100 = vld [vmem:[#allocation6 + $0x30] sm:$0xff]
    %v101 = vld [vmem:[#allocation6 + $0x38] sm:$0xff]
    %v102 = vld [vmem:[#allocation6 + $0x40] sm:$0xff]
    %v103 = vld [vmem:[#allocation6 + $0x48] sm:$0xff]
    %v104 = vld [vmem:[#allocation6 + $0x50] sm:$0xff]
    %v105 = vld [vmem:[#allocation6 + $0x58] sm:$0xff]
    %v106 = vld [vmem:[#allocation6 + $0x60] sm:$0xff]
    %v107 = vld [vmem:[#allocation6 + $0x68] sm:$0xff]
    %v108 = vld [vmem:[#allocation6 + $0x70] sm:$0xff]
    %v109 = vld [vmem:[#allocation6 + $0x78] sm:$0xff]
    %v110 = vld [vmem:[#allocation6 + $0x80] sm:$0xff]
    %v111 = vld [vmem:[#allocation6 + $0x88] sm:$0xff]
    %v112 = vld [vmem:[#allocation6 + $0x90] sm:$0xff]
    %v113 = vld [vmem:[#allocation6 + $0x98] sm:$0xff]
    %v114 = vld [vmem:[#allocation6 + $0xa0] sm:$0xff]
    %v115 = vld [vmem:[#allocation6 + $0xa8] sm:$0xff]
    %v116 = vld [vmem:[#allocation6 + $0xb0] sm:$0xff]
    %v117 = vld [vmem:[#allocation6 + $0xb8] sm:$0xff]
    %v118 = vld [vmem:[#allocation6 + $0xc0] sm:$0xff]
    %v119 = vld [vmem:[#allocation6 + $0xc8] sm:$0xff]
    %v120 = vld [vmem:[#allocation6 + $0xd0] sm:$0xff]
    %v121 = vld [vmem:[#allocation6 + $0xd8] sm:$0xff]
    %v122 = vld [vmem:[#allocation6 + $0xe0] sm:$0xff]
    %v123 = vld [vmem:[#allocation6 + $0xe8] sm:$0xff]
    %v124 = vld [vmem:[#allocation6 + $0xf0] sm:$0xff]
    %v125 = vld [vmem:[#allocation6 + $0xf8] sm:$0xff]
    %v126 = vld [vmem:[#allocation6 + $0x100] sm:$0xff]
    %v127 = vld [vmem:[#allocation6 + $0x108] sm:$0xff]
    %v128 = vld [vmem:[#allocation6 + $0x110] sm:$0xff]
    %v129 = vld [vmem:[#allocation6 + $0x118] sm:$0xff]
    %v130 = vld [vmem:[#allocation6 + $0x120] sm:$0xff]
    %v131 = vld [vmem:[#allocation6 + $0x128] sm:$0xff]
    %v132 = vld [vmem:[#allocation6 + $0x130] sm:$0xff]
    %v133 = vld [vmem:[#allocation6 + $0x138] sm:$0xff]
    %v134 = vld [vmem:[#allocation6 + $0x140] sm:$0xff]
    %v135 = vld [vmem:[#allocation6 + $0x148] sm:$0xff]
    %v136 = vld [vmem:[#allocation6 + $0x150] sm:$0xff]
    %v137 = vld [vmem:[#allocation6 + $0x158] sm:$0xff]
    %v138 = vld [vmem:[#allocation6 + $0x160] sm:$0xff]
    %v139 = vld [vmem:[#allocation6 + $0x168] sm:$0xff]
    %v140 = vld [vmem:[#allocation6 + $0x170] sm:$0xff]
    %v141 = vld [vmem:[#allocation6 + $0x178] sm:$0xff]
    %v142 = vld [vmem:[#allocation6 + $0x180] sm:$0xff]
    %v143 = vld [vmem:[#allocation6 + $0x188] sm:$0xff]
    %v144 = vld [vmem:[#allocation6 + $0x190] sm:$0xff]
    %v145 = vld [vmem:[#allocation6 + $0x198] sm:$0xff]
    %v146 = vld [vmem:[#allocation6 + $0x1a0] sm:$0xff]
    %v147 = vld [vmem:[#allocation6 + $0x1a8] sm:$0xff]
    %v148 = vld [vmem:[#allocation6 + $0x1b0] sm:$0xff]
    %v149 = vld [vmem:[#allocation6 + $0x1b8] sm:$0xff]
    %v150 = vld [vmem:[#allocation6 + $0x1c0] sm:$0xff]
    %v151 = vld [vmem:[#allocation6 + $0x1c8] sm:$0xff]
    %v152 = vld [vmem:[#allocation6 + $0x1d0] sm:$0xff]
    %v153 = vld [vmem:[#allocation6 + $0x1d8] sm:$0xff]
    %v154 = vld [vmem:[#allocation6 + $0x1e0] sm:$0xff]
    %v155 = vld [vmem:[#allocation6 + $0x1e8] sm:$0xff]
    %v156 = vld [vmem:[#allocation6 + $0x1f0] sm:$0xff]
    %v157 = vld [vmem:[#allocation6 + $0x1f8] sm:$0xff]
    %v158 = vld [vmem:[#allocation6 + $0x200] sm:$0xff]
    %v159 = vld [vmem:[#allocation6 + $0x208] sm:$0xff]
    %v160 = vld [vmem:[#allocation6 + $0x210] sm:$0xff]
    %v161 = vld [vmem:[#allocation6 + $0x218] sm:$0xff]
    %v162 = vld [vmem:[#allocation6 + $0x220] sm:$0xff]
    %v163 = vld [vmem:[#allocation6 + $0x228] sm:$0xff]
    %v164 = vld [vmem:[#allocation6 + $0x230] sm:$0xff]
    %v165 = vld [vmem:[#allocation6 + $0x238] sm:$0xff]
    %v166 = vld [vmem:[#allocation6 + $0x240] sm:$0xff]
    %v167 = vld [vmem:[#allocation6 + $0x248] sm:$0xff]
    %v168 = vld [vmem:[#allocation6 + $0x250] sm:$0xff]
    %v169 = vld [vmem:[#allocation6 + $0x258] sm:$0xff]
    %v170 = vld [vmem:[#allocation6 + $0x260] sm:$0xff]
    %v171 = vld [vmem:[#allocation6 + $0x268] sm:$0xff]
    %v172 = vld [vmem:[#allocation6 + $0x270] sm:$0xff]
    %v173 = vld [vmem:[#allocation6 + $0x278] sm:$0xff]
    %v174 = vld [vmem:[#allocation6 + $0x280] sm:$0xff]
    %v175 = vld [vmem:[#allocation6 + $0x288] sm:$0xff]
    %v176 = vld [vmem:[#allocation6 + $0x290] sm:$0xff]
    %v177 = vld [vmem:[#allocation6 + $0x298] sm:$0xff]
    %v178 = vld [vmem:[#allocation6 + $0x2a0] sm:$0xff]
    %v179 = vld [vmem:[#allocation6 + $0x2a8] sm:$0xff]
    %v180 = vld [vmem:[#allocation6 + $0x2b0] sm:$0xff]
    %v181 = vld [vmem:[#allocation6 + $0x2b8] sm:$0xff]
    %v182 = vld [vmem:[#allocation6 + $0x2c0] sm:$0xff]
    %v183 = vld [vmem:[#allocation6 + $0x2c8] sm:$0xff]
    %v184 = vld [vmem:[#allocation6 + $0x2d0] sm:$0xff]
    %v185 = vld [vmem:[#allocation6 + $0x2d8] sm:$0xff]
    %v186 = vld [vmem:[#allocation6 + $0x2e0] sm:$0xff]
    %v187 = vld [vmem:[#allocation6 + $0x2e8] sm:$0xff]
    %v188 = vld [vmem:[#allocation6 + $0x2f0] sm:$0xff]
    %v189 = vld [vmem:[#allocation6 + $0x2f8] sm:$0xff]
    %v190 = vld [vmem:[#allocation6 + $0x300] sm:$0xff]
    %v191 = vld [vmem:[#allocation6 + $0x308] sm:$0xff]
    %v192 = vld [vmem:[#allocation6 + $0x310] sm:$0xff]
    %v193 = vld [vmem:[#allocation6 + $0x318] sm:$0xff]
    %v194 = vld [vmem:[#allocation6 + $0x320] sm:$0xff]
    %v195 = vld [vmem:[#allocation6 + $0x328] sm:$0xff]
    %v196 = vld [vmem:[#allocation6 + $0x330] sm:$0xff]
    %v197 = vld [vmem:[#allocation6 + $0x338] sm:$0xff]
    %v198 = vld [vmem:[#allocation6 + $0x340] sm:$0xff]
    %v199 = vld [vmem:[#allocation6 + $0x348] sm:$0xff]
    %v200 = vld [vmem:[#allocation6 + $0x350] sm:$0xff]
    %v201 = vld [vmem:[#allocation6 + $0x358] sm:$0xff]
    %v202 = vld [vmem:[#allocation6 + $0x360] sm:$0xff]
    %v203 = vld [vmem:[#allocation6 + $0x368] sm:$0xff]
    %v204 = vld [vmem:[#allocation6 + $0x370] sm:$0xff]
    %v205 = vld [vmem:[#allocation6 + $0x378] sm:$0xff]
    %v206 = vld [vmem:[#allocation6 + $0x380] sm:$0xff]
    %v207 = vld [vmem:[#allocation6 + $0x388] sm:$0xff]
    %v208 = vld [vmem:[#allocation6 + $0x390] sm:$0xff]
    %v209 = vld [vmem:[#allocation6 + $0x398] sm:$0xff]
    %v210 = vld [vmem:[#allocation6 + $0x3a0] sm:$0xff]
    %v211 = vld [vmem:[#allocation6 + $0x3a8] sm:$0xff]
    %v212 = vld [vmem:[#allocation6 + $0x3b0] sm:$0xff]
    %v213 = vld [vmem:[#allocation6 + $0x3b8] sm:$0xff]
    %v214 = vld [vmem:[#allocation6 + $0x3c0] sm:$0xff]
    %v215 = vld [vmem:[#allocation6 + $0x3c8] sm:$0xff]
    %v216 = vld [vmem:[#allocation6 + $0x3d0] sm:$0xff]
    %v217 = vld [vmem:[#allocation6 + $0x3d8] sm:$0xff]
    %v218 = vld [vmem:[#allocation6 + $0x3e0] sm:$0xff]
    %v219 = vld [vmem:[#allocation6 + $0x3e8] sm:$0xff]
    %v220 = vld [vmem:[#allocation6 + $0x3f0] sm:$0xff]
    %v221 = vld [vmem:[#allocation6 + $0x3f8] sm:$0xff]
    %v222 = vpack.c.bf16 %v85, %v84
    %v223 = vld [vmem:[%s3] sm:$0xff]
    %v224 = vld [vmem:[%s3 + $0x8] sm:$0xff]
    %v225 = vld [vmem:[%s3 + $0x10] sm:$0xff]
    %v226 = vld [vmem:[%s3 + $0x18] sm:$0xff]
    %v227 = vld [vmem:[%s3 + $0x20] sm:$0xff]
    %v228 = vld [vmem:[%s3 + $0x28] sm:$0xff]
    %v229 = vld [vmem:[%s3 + $0x30] sm:$0xff]
    %v230 = vld [vmem:[%s3 + $0x38] sm:$0xff]
    %v239 = vunpack.c.l.b16 %v223
    %v240 = vunpack.c.h.b16 %v223
    %v241 = vunpack.c.l.b16 %v224
    %v242 = vunpack.c.h.b16 %v224
    %v243 = vunpack.c.l.b16 %v225
    %v244 = vunpack.c.h.b16 %v225
    %v245 = vunpack.c.l.b16 %v226
    %v246 = vunpack.c.h.b16 %v226
    %v247 = vunpack.c.l.b16 %v227
    %v248 = vunpack.c.h.b16 %v227
    %v249 = vunpack.c.l.b16 %v228
    %v250 = vunpack.c.h.b16 %v228
    %v251 = vunpack.c.l.b16 %v229
    %v252 = vunpack.c.h.b16 %v229
    %v253 = vunpack.c.l.b16 %v230
    %v254 = vunpack.c.h.b16 %v230
    %v255 = vpack.c.b16 %v241, %v239
    %v256 = vpack.c.b16 %v242, %v240
    %v257 = vpack.c.b16 %v245, %v243
    %v258 = vpack.c.b16 %v246, %v244
    %v259 = vpack.c.b16 %v249, %v247
    %v260 = vpack.c.b16 %v250, %v248
    %v261 = vpack.c.b16 %v253, %v251
    %v262 = vpack.c.b16 %v254, %v252
    %vm271 = vcmask 523264
    %v273 = vsel %vm271, %v222, 0
    %275 = vmatprep.subr.bf16.mxu0 %v256
    %276 = vmatpush1.bf16.msra.mxu0 %v255
    %277 = vmatprep.subr.bf16.mxu0 %v258
    %278 = vmatpush1.bf16.msra.mxu0 %v257
    %279 = vmatprep.subr.bf16.mxu0 %v260
    %280 = vmatpush1.bf16.msra.mxu0 %v259
    %281 = vmatprep.subr.bf16.mxu0 %v262
    %282 = vmatpush1.bf16.msra.mxu0 %v261
    %283 = vmatprep.subr.bf16.mxu0 0
    %284 = vmatpush1.bf16.msra.mxu0 0
    %285 = vmatprep.subr.bf16.mxu0 0
    %286 = vmatpush1.bf16.msra.mxu0 0
    %287 = vmatprep.subr.bf16.mxu0 0
    %288 = vmatpush1.bf16.msra.mxu0 0
    %289 = vmatprep.subr.bf16.mxu0 0
    %290 = vmatpush1.bf16.msra.mxu0 0
    %291 = vmatprep.subr.bf16.mxu0 0
    %292 = vmatpush1.bf16.msra.mxu0 0
    %293 = vmatprep.subr.bf16.mxu0 0
    %294 = vmatpush1.bf16.msra.mxu0 0
    %295 = vmatprep.subr.bf16.mxu0 0
    %296 = vmatpush1.bf16.msra.mxu0 0
    %297 = vmatprep.subr.bf16.mxu0 0
    %298 = vmatpush1.bf16.msra.mxu0 0
    %299 = vmatprep.subr.bf16.mxu0 0
    %300 = vmatpush1.bf16.msra.mxu0 0
    %301 = vmatprep.subr.bf16.mxu0 0
    %302 = vmatpush1.bf16.msra.mxu0 0
    %303 = vmatprep.subr.bf16.mxu0 0
    %304 = vmatpush1.bf16.msra.mxu0 0
    %305 = vmatprep.subr.bf16.mxu0 0
    %306 = vmatpush1.bf16.msra.mxu0 0
    %307 = vmatprep.mubr.bf16.mxu0 0
    %308 = vmatmul.mubr.bf16.gmra.mrb[0].mxu0 %v273
    %v309 = vpop.f32.mrb[0].mxu0
    %v310 = vadd.f32 0.0, %v309
    %v311 = vpop.f32.mrb[0].mxu0
    %v312 = vadd.f32 0.0, %v311
    %v313 = vpop.f32.mrb[0].mxu0
    %v314 = vadd.f32 0.0, %v313
    %v315 = vpop.f32.mrb[0].mxu0
    %v316 = vadd.f32 0.0, %v315
    %317 = vdwg.mxu0
    %v326 = vunpack.c.l.b16 %v86
    %v327 = vunpack.c.h.b16 %v86
    %v328 = vunpack.c.l.b16 %v87
    %v329 = vunpack.c.h.b16 %v87
    %v330 = vunpack.c.l.b16 %v88
    %v331 = vunpack.c.h.b16 %v88
    %v332 = vunpack.c.l.b16 %v89
    %v333 = vunpack.c.h.b16 %v89
    %v334 = vunpack.c.l.b16 %v90
    %v335 = vunpack.c.h.b16 %v90
    %v336 = vunpack.c.l.b16 %v91
    %v337 = vunpack.c.h.b16 %v91
    %v338 = vunpack.c.l.b16 %v92
    %v339 = vunpack.c.h.b16 %v92
    %v340 = vunpack.c.l.b16 %v93
    %v341 = vunpack.c.h.b16 %v93
    %v342 = vpack.c.b16 %v334, %v326
    %v343 = vpack.c.b16 %v335, %v327
    %v344 = vpack.c.b16 %v336, %v328
    %v345 = vpack.c.b16 %v337, %v329
    %v346 = vpack.c.b16 %v338, %v330
    %v347 = vpack.c.b16 %v339, %v331
    %v348 = vpack.c.b16 %v340, %v332
    %v349 = vpack.c.b16 %v341, %v333
    %v486 = vunpack.c.l.b16 %v94
    %v487 = vunpack.c.h.b16 %v94
    %v488 = vunpack.c.l.b16 %v95
    %v489 = vunpack.c.h.b16 %v95
    %v490 = vunpack.c.l.b16 %v96
    %v491 = vunpack.c.h.b16 %v96
    %v492 = vunpack.c.l.b16 %v97
    %v493 = vunpack.c.h.b16 %v97
    %v494 = vunpack.c.l.b16 %v98
    %v495 = vunpack.c.h.b16 %v98
    %v496 = vunpack.c.l.b16 %v99
    %v497 = vunpack.c.h.b16 %v99
    %v498 = vunpack.c.l.b16 %v100
    %v499 = vunpack.c.h.b16 %v100
    %v500 = vunpack.c.l.b16 %v101
    %v501 = vunpack.c.h.b16 %v101
    %v502 = vunpack.c.l.b16 %v102
    %v503 = vunpack.c.h.b16 %v102
    %v504 = vunpack.c.l.b16 %v103
    %v505 = vunpack.c.h.b16 %v103
    %v506 = vunpack.c.l.b16 %v104
    %v507 = vunpack.c.h.b16 %v104
    %v508 = vunpack.c.l.b16 %v105
    %v509 = vunpack.c.h.b16 %v105
    %v510 = vunpack.c.l.b16 %v106
    %v511 = vunpack.c.h.b16 %v106
    %v512 = vunpack.c.l.b16 %v107
    %v513 = vunpack.c.h.b16 %v107
    %v514 = vunpack.c.l.b16 %v108
    %v515 = vunpack.c.h.b16 %v108
    %v516 = vunpack.c.l.b16 %v109
    %v517 = vunpack.c.h.b16 %v109
    %v518 = vunpack.c.l.b16 %v110
    %v519 = vunpack.c.h.b16 %v110
    %v520 = vunpack.c.l.b16 %v111
    %v521 = vunpack.c.h.b16 %v111
    %v522 = vunpack.c.l.b16 %v112
    %v523 = vunpack.c.h.b16 %v112
    %v524 = vunpack.c.l.b16 %v113
    %v525 = vunpack.c.h.b16 %v113
    %v526 = vunpack.c.l.b16 %v114
    %v527 = vunpack.c.h.b16 %v114
    %v528 = vunpack.c.l.b16 %v115
    %v529 = vunpack.c.h.b16 %v115
    %v530 = vunpack.c.l.b16 %v116
    %v531 = vunpack.c.h.b16 %v116
    %v532 = vunpack.c.l.b16 %v117
    %v533 = vunpack.c.h.b16 %v117
    %v534 = vunpack.c.l.b16 %v118
    %v535 = vunpack.c.h.b16 %v118
    %v536 = vunpack.c.l.b16 %v119
    %v537 = vunpack.c.h.b16 %v119
    %v538 = vunpack.c.l.b16 %v120
    %v539 = vunpack.c.h.b16 %v120
    %v540 = vunpack.c.l.b16 %v121
    %v541 = vunpack.c.h.b16 %v121
    %v542 = vunpack.c.l.b16 %v122
    %v543 = vunpack.c.h.b16 %v122
    %v544 = vunpack.c.l.b16 %v123
    %v545 = vunpack.c.h.b16 %v123
    %v546 = vunpack.c.l.b16 %v124
    %v547 = vunpack.c.h.b16 %v124
    %v548 = vunpack.c.l.b16 %v125
    %v549 = vunpack.c.h.b16 %v125
    %v550 = vunpack.c.l.b16 %v126
    %v551 = vunpack.c.h.b16 %v126
    %v552 = vunpack.c.l.b16 %v127
    %v553 = vunpack.c.h.b16 %v127
    %v554 = vunpack.c.l.b16 %v128
    %v555 = vunpack.c.h.b16 %v128
    %v556 = vunpack.c.l.b16 %v129
    %v557 = vunpack.c.h.b16 %v129
    %v558 = vunpack.c.l.b16 %v130
    %v559 = vunpack.c.h.b16 %v130
    %v560 = vunpack.c.l.b16 %v131
    %v561 = vunpack.c.h.b16 %v131
    %v562 = vunpack.c.l.b16 %v132
    %v563 = vunpack.c.h.b16 %v132
    %v564 = vunpack.c.l.b16 %v133
    %v565 = vunpack.c.h.b16 %v133
    %v566 = vunpack.c.l.b16 %v134
    %v567 = vunpack.c.h.b16 %v134
    %v568 = vunpack.c.l.b16 %v135
    %v569 = vunpack.c.h.b16 %v135
    %v570 = vunpack.c.l.b16 %v136
    %v571 = vunpack.c.h.b16 %v136
    %v572 = vunpack.c.l.b16 %v137
    %v573 = vunpack.c.h.b16 %v137
    %v574 = vunpack.c.l.b16 %v138
    %v575 = vunpack.c.h.b16 %v138
    %v576 = vunpack.c.l.b16 %v139
    %v577 = vunpack.c.h.b16 %v139
    %v578 = vunpack.c.l.b16 %v140
    %v579 = vunpack.c.h.b16 %v140
    %v580 = vunpack.c.l.b16 %v141
    %v581 = vunpack.c.h.b16 %v141
    %v582 = vunpack.c.l.b16 %v142
    %v583 = vunpack.c.h.b16 %v142
    %v584 = vunpack.c.l.b16 %v143
    %v585 = vunpack.c.h.b16 %v143
    %v586 = vunpack.c.l.b16 %v144
    %v587 = vunpack.c.h.b16 %v144
    %v588 = vunpack.c.l.b16 %v145
    %v589 = vunpack.c.h.b16 %v145
    %v590 = vunpack.c.l.b16 %v146
    %v591 = vunpack.c.h.b16 %v146
    %v592 = vunpack.c.l.b16 %v147
    %v593 = vunpack.c.h.b16 %v147
    %v594 = vunpack.c.l.b16 %v148
    %v595 = vunpack.c.h.b16 %v148
    %v596 = vunpack.c.l.b16 %v149
    %v597 = vunpack.c.h.b16 %v149
    %v598 = vunpack.c.l.b16 %v150
    %v599 = vunpack.c.h.b16 %v150
    %v600 = vunpack.c.l.b16 %v151
    %v601 = vunpack.c.h.b16 %v151
    %v602 = vunpack.c.l.b16 %v152
    %v603 = vunpack.c.h.b16 %v152
    %v604 = vunpack.c.l.b16 %v153
    %v605 = vunpack.c.h.b16 %v153
    %v606 = vunpack.c.l.b16 %v154
    %v607 = vunpack.c.h.b16 %v154
    %v608 = vunpack.c.l.b16 %v155
    %v609 = vunpack.c.h.b16 %v155
    %v610 = vunpack.c.l.b16 %v156
    %v611 = vunpack.c.h.b16 %v156
    %v612 = vunpack.c.l.b16 %v157
    %v613 = vunpack.c.h.b16 %v157
    %v614 = vunpack.c.l.b16 %v158
    %v615 = vunpack.c.h.b16 %v158
    %v616 = vunpack.c.l.b16 %v159
    %v617 = vunpack.c.h.b16 %v159
    %v618 = vunpack.c.l.b16 %v160
    %v619 = vunpack.c.h.b16 %v160
    %v620 = vunpack.c.l.b16 %v161
    %v621 = vunpack.c.h.b16 %v161
    %v622 = vunpack.c.l.b16 %v162
    %v623 = vunpack.c.h.b16 %v162
    %v624 = vunpack.c.l.b16 %v163
    %v625 = vunpack.c.h.b16 %v163
    %v626 = vunpack.c.l.b16 %v164
    %v627 = vunpack.c.h.b16 %v164
    %v628 = vunpack.c.l.b16 %v165
    %v629 = vunpack.c.h.b16 %v165
    %v630 = vunpack.c.l.b16 %v166
    %v631 = vunpack.c.h.b16 %v166
    %v632 = vunpack.c.l.b16 %v167
    %v633 = vunpack.c.h.b16 %v167
    %v634 = vunpack.c.l.b16 %v168
    %v635 = vunpack.c.h.b16 %v168
    %v636 = vunpack.c.l.b16 %v169
    %v637 = vunpack.c.h.b16 %v169
    %v638 = vunpack.c.l.b16 %v170
    %v639 = vunpack.c.h.b16 %v170
    %v640 = vunpack.c.l.b16 %v171
    %v641 = vunpack.c.h.b16 %v171
    %v642 = vunpack.c.l.b16 %v172
    %v643 = vunpack.c.h.b16 %v172
    %v644 = vunpack.c.l.b16 %v173
    %v645 = vunpack.c.h.b16 %v173
    %v646 = vunpack.c.l.b16 %v174
    %v647 = vunpack.c.h.b16 %v174
    %v648 = vunpack.c.l.b16 %v175
    %v649 = vunpack.c.h.b16 %v175
    %v650 = vunpack.c.l.b16 %v176
    %v651 = vunpack.c.h.b16 %v176
    %v652 = vunpack.c.l.b16 %v177
    %v653 = vunpack.c.h.b16 %v177
    %v654 = vunpack.c.l.b16 %v178
    %v655 = vunpack.c.h.b16 %v178
    %v656 = vunpack.c.l.b16 %v179
    %v657 = vunpack.c.h.b16 %v179
    %v658 = vunpack.c.l.b16 %v180
    %v659 = vunpack.c.h.b16 %v180
    %v660 = vunpack.c.l.b16 %v181
    %v661 = vunpack.c.h.b16 %v181
    %v662 = vunpack.c.l.b16 %v182
    %v663 = vunpack.c.h.b16 %v182
    %v664 = vunpack.c.l.b16 %v183
    %v665 = vunpack.c.h.b16 %v183
    %v666 = vunpack.c.l.b16 %v184
    %v667 = vunpack.c.h.b16 %v184
    %v668 = vunpack.c.l.b16 %v185
    %v669 = vunpack.c.h.b16 %v185
    %v670 = vunpack.c.l.b16 %v186
    %v671 = vunpack.c.h.b16 %v186
    %v672 = vunpack.c.l.b16 %v187
    %v673 = vunpack.c.h.b16 %v187
    %v674 = vunpack.c.l.b16 %v188
    %v675 = vunpack.c.h.b16 %v188
    %v676 = vunpack.c.l.b16 %v189
    %v677 = vunpack.c.h.b16 %v189
    %v678 = vunpack.c.l.b16 %v190
    %v679 = vunpack.c.h.b16 %v190
    %v680 = vunpack.c.l.b16 %v191
    %v681 = vunpack.c.h.b16 %v191
    %v682 = vunpack.c.l.b16 %v192
    %v683 = vunpack.c.h.b16 %v192
    %v684 = vunpack.c.l.b16 %v193
    %v685 = vunpack.c.h.b16 %v193
    %v686 = vunpack.c.l.b16 %v194
    %v687 = vunpack.c.h.b16 %v194
    %v688 = vunpack.c.l.b16 %v195
    %v689 = vunpack.c.h.b16 %v195
    %v690 = vunpack.c.l.b16 %v196
    %v691 = vunpack.c.h.b16 %v196
    %v692 = vunpack.c.l.b16 %v197
    %v693 = vunpack.c.h.b16 %v197
    %v694 = vunpack.c.l.b16 %v198
    %v695 = vunpack.c.h.b16 %v198
    %v696 = vunpack.c.l.b16 %v199
    %v697 = vunpack.c.h.b16 %v199
    %v698 = vunpack.c.l.b16 %v200
    %v699 = vunpack.c.h.b16 %v200
    %v700 = vunpack.c.l.b16 %v201
    %v701 = vunpack.c.h.b16 %v201
    %v702 = vunpack.c.l.b16 %v202
    %v703 = vunpack.c.h.b16 %v202
    %v704 = vunpack.c.l.b16 %v203
    %v705 = vunpack.c.h.b16 %v203
    %v706 = vunpack.c.l.b16 %v204
    %v707 = vunpack.c.h.b16 %v204
    %v708 = vunpack.c.l.b16 %v205
    %v709 = vunpack.c.h.b16 %v205
    %v710 = vunpack.c.l.b16 %v206
    %v711 = vunpack.c.h.b16 %v206
    %v712 = vunpack.c.l.b16 %v207
    %v713 = vunpack.c.h.b16 %v207
    %v714 = vunpack.c.l.b16 %v208
    %v715 = vunpack.c.h.b16 %v208
    %v716 = vunpack.c.l.b16 %v209
    %v717 = vunpack.c.h.b16 %v209
    %v718 = vunpack.c.l.b16 %v210
    %v719 = vunpack.c.h.b16 %v210
    %v720 = vunpack.c.l.b16 %v211
    %v721 = vunpack.c.h.b16 %v211
    %v722 = vunpack.c.l.b16 %v212
    %v723 = vunpack.c.h.b16 %v212
    %v724 = vunpack.c.l.b16 %v213
    %v725 = vunpack.c.h.b16 %v213
    %v726 = vunpack.c.l.b16 %v214
    %v727 = vunpack.c.h.b16 %v214
    %v728 = vunpack.c.l.b16 %v215
    %v729 = vunpack.c.h.b16 %v215
    %v730 = vunpack.c.l.b16 %v216
    %v731 = vunpack.c.h.b16 %v216
    %v732 = vunpack.c.l.b16 %v217
    %v733 = vunpack.c.h.b16 %v217
    %v734 = vunpack.c.l.b16 %v218
    %v735 = vunpack.c.h.b16 %v218
    %v736 = vunpack.c.l.b16 %v219
    %v737 = vunpack.c.h.b16 %v219
    %v738 = vunpack.c.l.b16 %v220
    %v739 = vunpack.c.h.b16 %v220
    %v740 = vunpack.c.l.b16 %v221
    %v741 = vunpack.c.h.b16 %v221
    %v742 = vpack.c.b16 %v488, %v486
    %v743 = vpack.c.b16 %v489, %v487
    %v744 = vpack.c.b16 %v492, %v490
    %v745 = vpack.c.b16 %v493, %v491
    %v746 = vpack.c.b16 %v496, %v494
    %v747 = vpack.c.b16 %v497, %v495
    %v748 = vpack.c.b16 %v500, %v498
    %v749 = vpack.c.b16 %v501, %v499
    %v750 = vpack.c.b16 %v504, %v502
    %v751 = vpack.c.b16 %v505, %v503
    %v752 = vpack.c.b16 %v508, %v506
    %v753 = vpack.c.b16 %v509, %v507
    %v754 = vpack.c.b16 %v512, %v510
    %v755 = vpack.c.b16 %v513, %v511
    %v756 = vpack.c.b16 %v516, %v514
    %v757 = vpack.c.b16 %v517, %v515
    %v758 = vpack.c.b16 %v520, %v518
    %v759 = vpack.c.b16 %v521, %v519
    %v760 = vpack.c.b16 %v524, %v522
    %v761 = vpack.c.b16 %v525, %v523
    %v762 = vpack.c.b16 %v528, %v526
    %v763 = vpack.c.b16 %v529, %v527
    %v764 = vpack.c.b16 %v532, %v530
    %v765 = vpack.c.b16 %v533, %v531
    %v766 = vpack.c.b16 %v536, %v534
    %v767 = vpack.c.b16 %v537, %v535
    %v768 = vpack.c.b16 %v540, %v538
    %v769 = vpack.c.b16 %v541, %v539
    %v770 = vpack.c.b16 %v544, %v542
    %v771 = vpack.c.b16 %v545, %v543
    %v772 = vpack.c.b16 %v548, %v546
    %v773 = vpack.c.b16 %v549, %v547
    %v774 = vpack.c.b16 %v552, %v550
    %v775 = vpack.c.b16 %v553, %v551
    %v776 = vpack.c.b16 %v556, %v554
    %v777 = vpack.c.b16 %v557, %v555
    %v778 = vpack.c.b16 %v560, %v558
    %v779 = vpack.c.b16 %v561, %v559
    %v780 = vpack.c.b16 %v564, %v562
    %v781 = vpack.c.b16 %v565, %v563
    %v782 = vpack.c.b16 %v568, %v566
    %v783 = vpack.c.b16 %v569, %v567
    %v784 = vpack.c.b16 %v572, %v570
    %v785 = vpack.c.b16 %v573, %v571
    %v786 = vpack.c.b16 %v576, %v574
    %v787 = vpack.c.b16 %v577, %v575
    %v788 = vpack.c.b16 %v580, %v578
    %v789 = vpack.c.b16 %v581, %v579
    %v790 = vpack.c.b16 %v584, %v582
    %v791 = vpack.c.b16 %v585, %v583
    %v792 = vpack.c.b16 %v588, %v586
    %v793 = vpack.c.b16 %v589, %v587
    %v794 = vpack.c.b16 %v592, %v590
    %v795 = vpack.c.b16 %v593, %v591
    %v796 = vpack.c.b16 %v596, %v594
    %v797 = vpack.c.b16 %v597, %v595
    %v798 = vpack.c.b16 %v600, %v598
    %v799 = vpack.c.b16 %v601, %v599
    %v800 = vpack.c.b16 %v604, %v602
    %v801 = vpack.c.b16 %v605, %v603
    %v802 = vpack.c.b16 %v608, %v606
    %v803 = vpack.c.b16 %v609, %v607
    %v804 = vpack.c.b16 %v612, %v610
    %v805 = vpack.c.b16 %v613, %v611
    %v806 = vpack.c.b16 %v616, %v614
    %v807 = vpack.c.b16 %v617, %v615
    %v808 = vpack.c.b16 %v620, %v618
    %v809 = vpack.c.b16 %v621, %v619
    %v810 = vpack.c.b16 %v624, %v622
    %v811 = vpack.c.b16 %v625, %v623
    %v812 = vpack.c.b16 %v628, %v626
    %v813 = vpack.c.b16 %v629, %v627
    %v814 = vpack.c.b16 %v632, %v630
    %v815 = vpack.c.b16 %v633, %v631
    %v816 = vpack.c.b16 %v636, %v634
    %v817 = vpack.c.b16 %v637, %v635
    %v818 = vpack.c.b16 %v640, %v638
    %v819 = vpack.c.b16 %v641, %v639
    %v820 = vpack.c.b16 %v644, %v642
    %v821 = vpack.c.b16 %v645, %v643
    %v822 = vpack.c.b16 %v648, %v646
    %v823 = vpack.c.b16 %v649, %v647
    %v824 = vpack.c.b16 %v652, %v650
    %v825 = vpack.c.b16 %v653, %v651
    %v826 = vpack.c.b16 %v656, %v654
    %v827 = vpack.c.b16 %v657, %v655
    %v828 = vpack.c.b16 %v660, %v658
    %v829 = vpack.c.b16 %v661, %v659
    %v830 = vpack.c.b16 %v664, %v662
    %v831 = vpack.c.b16 %v665, %v663
    %v832 = vpack.c.b16 %v668, %v666
    %v833 = vpack.c.b16 %v669, %v667
    %v834 = vpack.c.b16 %v672, %v670
    %v835 = vpack.c.b16 %v673, %v671
    %v836 = vpack.c.b16 %v676, %v674
    %v837 = vpack.c.b16 %v677, %v675
    %v838 = vpack.c.b16 %v680, %v678
    %v839 = vpack.c.b16 %v681, %v679
    %v840 = vpack.c.b16 %v684, %v682
    %v841 = vpack.c.b16 %v685, %v683
    %v842 = vpack.c.b16 %v688, %v686
    %v843 = vpack.c.b16 %v689, %v687
    %v844 = vpack.c.b16 %v692, %v690
    %v845 = vpack.c.b16 %v693, %v691
    %v846 = vpack.c.b16 %v696, %v694
    %v847 = vpack.c.b16 %v697, %v695
    %v848 = vpack.c.b16 %v700, %v698
    %v849 = vpack.c.b16 %v701, %v699
    %v850 = vpack.c.b16 %v704, %v702
    %v851 = vpack.c.b16 %v705, %v703
    %v852 = vpack.c.b16 %v708, %v706
    %v853 = vpack.c.b16 %v709, %v707
    %v854 = vpack.c.b16 %v712, %v710
    %v855 = vpack.c.b16 %v713, %v711
    %v856 = vpack.c.b16 %v716, %v714
    %v857 = vpack.c.b16 %v717, %v715
    %v858 = vpack.c.b16 %v720, %v718
    %v859 = vpack.c.b16 %v721, %v719
    %v860 = vpack.c.b16 %v724, %v722
    %v861 = vpack.c.b16 %v725, %v723
    %v862 = vpack.c.b16 %v728, %v726
    %v863 = vpack.c.b16 %v729, %v727
    %v864 = vpack.c.b16 %v732, %v730
    %v865 = vpack.c.b16 %v733, %v731
    %v866 = vpack.c.b16 %v736, %v734
    %v867 = vpack.c.b16 %v737, %v735
    %v868 = vpack.c.b16 %v740, %v738
    %v869 = vpack.c.b16 %v741, %v739
    %998 = vmatprep.subr.bf16.mxu0 %v743
    %999 = vmatpush1.bf16.msra.mxu0 %v742
    %1000 = vmatprep.subr.bf16.mxu0 %v745
    %1001 = vmatpush1.bf16.msra.mxu0 %v744
    %1002 = vmatprep.subr.bf16.mxu0 %v747
    %1003 = vmatpush1.bf16.msra.mxu0 %v746
    %1004 = vmatprep.subr.bf16.mxu0 %v749
    %1005 = vmatpush1.bf16.msra.mxu0 %v748
    %1006 = vmatprep.subr.bf16.mxu0 %v751
    %1007 = vmatpush1.bf16.msra.mxu0 %v750
    %1008 = vmatprep.subr.bf16.mxu0 %v753
    %1009 = vmatpush1.bf16.msra.mxu0 %v752
    %1010 = vmatprep.subr.bf16.mxu0 %v755
    %1011 = vmatpush1.bf16.msra.mxu0 %v754
    %1012 = vmatprep.subr.bf16.mxu0 %v757
    %1013 = vmatpush1.bf16.msra.mxu0 %v756
    %1014 = vmatprep.subr.bf16.mxu0 %v759
    %1015 = vmatpush1.bf16.msra.mxu0 %v758
    %1016 = vmatprep.subr.bf16.mxu0 %v761
    %1017 = vmatpush1.bf16.msra.mxu0 %v760
    %1018 = vmatprep.subr.bf16.mxu0 %v763
    %1019 = vmatpush1.bf16.msra.mxu0 %v762
    %1020 = vmatprep.subr.bf16.mxu0 %v765
    %1021 = vmatpush1.bf16.msra.mxu0 %v764
    %1022 = vmatprep.subr.bf16.mxu0 %v767
    %1023 = vmatpush1.bf16.msra.mxu0 %v766
    %1024 = vmatprep.subr.bf16.mxu0 %v769
    %1025 = vmatpush1.bf16.msra.mxu0 %v768
    %1026 = vmatprep.subr.bf16.mxu0 %v771
    %1027 = vmatpush1.bf16.msra.mxu0 %v770
    %1028 = vmatprep.subr.bf16.mxu0 %v773
    %1029 = vmatpush1.bf16.msra.mxu0 %v772
    %1030 = vmatprep.mubr.bf16.mxu0 %v343
    %1031 = vmatmul.mubr.bf16.gmra.mrb[0].mxu0 %v342
    %v1032 = vpop.f32.mrb[0].mxu0
    %v1033 = vadd.f32 %v310, %v1032
    %v1034 = vpop.f32.mrb[0].mxu0
    %v1035 = vadd.f32 %v312, %v1034
    %v1036 = vpop.f32.mrb[0].mxu0
    %v1037 = vadd.f32 %v314, %v1036
    %v1038 = vpop.f32.mrb[0].mxu0
    %v1039 = vadd.f32 %v316, %v1038
    %1040 = vdwg.mxu0
    %1041 = vmatprep.subr.bf16.mxu0 %v775
    %1042 = vmatpush1.bf16.msra.mxu0 %v774
    %1043 = vmatprep.subr.bf16.mxu0 %v777
    %1044 = vmatpush1.bf16.msra.mxu0 %v776
    %1045 = vmatprep.subr.bf16.mxu0 %v779
    %1046 = vmatpush1.bf16.msra.mxu0 %v778
    %1047 = vmatprep.subr.bf16.mxu0 %v781
    %1048 = vmatpush1.bf16.msra.mxu0 %v780
    %1049 = vmatprep.subr.bf16.mxu0 %v783
    %1050 = vmatpush1.bf16.msra.mxu0 %v782
    %1051 = vmatprep.subr.bf16.mxu0 %v785
    %1052 = vmatpush1.bf16.msra.mxu0 %v784
    %1053 = vmatprep.subr.bf16.mxu0 %v787
    %1054 = vmatpush1.bf16.msra.mxu0 %v786
    %1055 = vmatprep.subr.bf16.mxu0 %v789
    %1056 = vmatpush1.bf16.msra.mxu0 %v788
    %1057 = vmatprep.subr.bf16.mxu0 %v791
    %1058 = vmatpush1.bf16.msra.mxu0 %v790
    %1059 = vmatprep.subr.bf16.mxu0 %v793
    %1060 = vmatpush1.bf16.msra.mxu0 %v792
    %1061 = vmatprep.subr.bf16.mxu0 %v795
    %1062 = vmatpush1.bf16.msra.mxu0 %v794
    %1063 = vmatprep.subr.bf16.mxu0 %v797
    %1064 = vmatpush1.bf16.msra.mxu0 %v796
    %1065 = vmatprep.subr.bf16.mxu0 %v799
    %1066 = vmatpush1.bf16.msra.mxu0 %v798
    %1067 = vmatprep.subr.bf16.mxu0 %v801
    %1068 = vmatpush1.bf16.msra.mxu0 %v800
    %1069 = vmatprep.subr.bf16.mxu0 %v803
    %1070 = vmatpush1.bf16.msra.mxu0 %v802
    %1071 = vmatprep.subr.bf16.mxu0 %v805
    %1072 = vmatpush1.bf16.msra.mxu0 %v804
    %1073 = vmatprep.mubr.bf16.mxu0 %v345
    %1074 = vmatmul.mubr.bf16.gmra.mrb[0].mxu0 %v344
    %v1075 = vpop.f32.mrb[0].mxu0
    %v1076 = vadd.f32 %v1033, %v1075
    %v1077 = vpop.f32.mrb[0].mxu0
    %v1078 = vadd.f32 %v1035, %v1077
    %v1079 = vpop.f32.mrb[0].mxu0
    %v1080 = vadd.f32 %v1037, %v1079
    %v1081 = vpop.f32.mrb[0].mxu0
    %v1082 = vadd.f32 %v1039, %v1081
    %1083 = vdwg.mxu0
    %1084 = vmatprep.subr.bf16.mxu0 %v807
    %1085 = vmatpush1.bf16.msra.mxu0 %v806
    %1086 = vmatprep.subr.bf16.mxu0 %v809
    %1087 = vmatpush1.bf16.msra.mxu0 %v808
    %1088 = vmatprep.subr.bf16.mxu0 %v811
    %1089 = vmatpush1.bf16.msra.mxu0 %v810
    %1090 = vmatprep.subr.bf16.mxu0 %v813
    %1091 = vmatpush1.bf16.msra.mxu0 %v812
    %1092 = vmatprep.subr.bf16.mxu0 %v815
    %1093 = vmatpush1.bf16.msra.mxu0 %v814
    %1094 = vmatprep.subr.bf16.mxu0 %v817
    %1095 = vmatpush1.bf16.msra.mxu0 %v816
    %1096 = vmatprep.subr.bf16.mxu0 %v819
    %1097 = vmatpush1.bf16.msra.mxu0 %v818
    %1098 = vmatprep.subr.bf16.mxu0 %v821
    %1099 = vmatpush1.bf16.msra.mxu0 %v820
    %1100 = vmatprep.subr.bf16.mxu0 %v823
    %1101 = vmatpush1.bf16.msra.mxu0 %v822
    %1102 = vmatprep.subr.bf16.mxu0 %v825
    %1103 = vmatpush1.bf16.msra.mxu0 %v824
    %1104 = vmatprep.subr.bf16.mxu0 %v827
    %1105 = vmatpush1.bf16.msra.mxu0 %v826
    %1106 = vmatprep.subr.bf16.mxu0 %v829
    %1107 = vmatpush1.bf16.msra.mxu0 %v828
    %1108 = vmatprep.subr.bf16.mxu0 %v831
    %1109 = vmatpush1.bf16.msra.mxu0 %v830
    %1110 = vmatprep.subr.bf16.mxu0 %v833
    %1111 = vmatpush1.bf16.msra.mxu0 %v832
    %1112 = vmatprep.subr.bf16.mxu0 %v835
    %1113 = vmatpush1.bf16.msra.mxu0 %v834
    %1114 = vmatprep.subr.bf16.mxu0 %v837
    %1115 = vmatpush1.bf16.msra.mxu0 %v836
    %1116 = vmatprep.mubr.bf16.mxu0 %v347
    %1117 = vmatmul.mubr.bf16.gmra.mrb[0].mxu0 %v346
    %v1118 = vpop.f32.mrb[0].mxu0
    %v1119 = vadd.f32 %v1076, %v1118
    %v1120 = vpop.f32.mrb[0].mxu0
    %v1121 = vadd.f32 %v1078, %v1120
    %v1122 = vpop.f32.mrb[0].mxu0
    %v1123 = vadd.f32 %v1080, %v1122
    %v1124 = vpop.f32.mrb[0].mxu0
    %v1125 = vadd.f32 %v1082, %v1124
    %1126 = vdwg.mxu0
    %1127 = vmatprep.subr.bf16.mxu0 %v839
    %1128 = vmatpush1.bf16.msra.mxu0 %v838
    %1129 = vmatprep.subr.bf16.mxu0 %v841
    %1130 = vmatpush1.bf16.msra.mxu0 %v840
    %1131 = vmatprep.subr.bf16.mxu0 %v843
    %1132 = vmatpush1.bf16.msra.mxu0 %v842
    %1133 = vmatprep.subr.bf16.mxu0 %v845
    %1134 = vmatpush1.bf16.msra.mxu0 %v844
    %1135 = vmatprep.subr.bf16.mxu0 %v847
    %1136 = vmatpush1.bf16.msra.mxu0 %v846
    %1137 = vmatprep.subr.bf16.mxu0 %v849
    %1138 = vmatpush1.bf16.msra.mxu0 %v848
    %1139 = vmatprep.subr.bf16.mxu0 %v851
    %1140 = vmatpush1.bf16.msra.mxu0 %v850
    %1141 = vmatprep.subr.bf16.mxu0 %v853
    %1142 = vmatpush1.bf16.msra.mxu0 %v852
    %1143 = vmatprep.subr.bf16.mxu0 %v855
    %1144 = vmatpush1.bf16.msra.mxu0 %v854
    %1145 = vmatprep.subr.bf16.mxu0 %v857
    %1146 = vmatpush1.bf16.msra.mxu0 %v856
    %1147 = vmatprep.subr.bf16.mxu0 %v859
    %1148 = vmatpush1.bf16.msra.mxu0 %v858
    %1149 = vmatprep.subr.bf16.mxu0 %v861
    %1150 = vmatpush1.bf16.msra.mxu0 %v860
    %1151 = vmatprep.subr.bf16.mxu0 %v863
    %1152 = vmatpush1.bf16.msra.mxu0 %v862
    %1153 = vmatprep.subr.bf16.mxu0 %v865
    %1154 = vmatpush1.bf16.msra.mxu0 %v864
    %1155 = vmatprep.subr.bf16.mxu0 %v867
    %1156 = vmatpush1.bf16.msra.mxu0 %v866
    %1157 = vmatprep.subr.bf16.mxu0 %v869
    %1158 = vmatpush1.bf16.msra.mxu0 %v868
    %1159 = vmatprep.mubr.bf16.mxu0 %v349
    %1160 = vmatmul.mubr.bf16.gmra.mrb[0].mxu0 %v348
    %v1161 = vpop.f32.mrb[0].mxu0
    %v1162 = vadd.f32 %v1119, %v1161
    %v1163 = vpop.f32.mrb[0].mxu0
    %v1164 = vadd.f32 %v1121, %v1163
    %v1165 = vpop.f32.mrb[0].mxu0
    %v1166 = vadd.f32 %v1123, %v1165
    %v1167 = vpop.f32.mrb[0].mxu0
    %v1168 = vadd.f32 %v1125, %v1167
    %1169 = vdwg.mxu0
    %v1170 = vld [vmem:[%s4] sm:$0x3]
    %v1172 = vlaneseq
    %v1173 = vshrl.u32 %v1172, 7
    %v1174 = vsub.s32 0, %v1173
    %v1175 = vrot.slane %v1170, %v1174
    %v1176 = vlaneseq
    %v1177 = vshrl.u32 %v1176, 7
    %v1178 = vsub.s32 1, %v1177
    %v1179 = vrot.slane %v1170, %v1178
    %v1182 = vadd.f32 %v1162, %v1175
    %v1183 = vadd.f32 %v1164, %v1179
    %v1184 = vadd.f32 %v1166, %v1175
    %v1185 = vadd.f32 %v1168, %v1179
    %v1186 = vxor.u32 %v1182, 2147483648
    %v1187 = vxor.u32 %v1183, 2147483648
    %v1188 = vxor.u32 %v1184, 2147483648
    %v1189 = vxor.u32 %v1185, 2147483648
    %v1190 = vmul.f32 %v1186, 1.442695
    %v1191 = vpow.pop %v1190
    %v1192 = vmul.f32 %v1187, 1.442695
    %v1193 = vpow.pop %v1192
    %v1194 = vmul.f32 %v1188, 1.442695
    %v1195 = vpow.pop %v1194
    %v1196 = vmul.f32 %v1189, 1.442695
    %v1197 = vpow.pop %v1196
    %v1198 = vadd.f32 %v1191, 1.0
    %v1199 = vadd.f32 %v1193, 1.0
    %v1200 = vadd.f32 %v1195, 1.0
    %v1201 = vadd.f32 %v1197, 1.0
    %v1202 = vrcp.pop %v1198
    %v1203 = vmul.f32 1.0, %v1202
    %v1204 = vrcp.pop %v1199
    %v1205 = vmul.f32 1.0, %v1204
    %v1206 = vrcp.pop %v1200
    %v1207 = vmul.f32 1.0, %v1206
    %v1208 = vrcp.pop %v1201
    %v1209 = vmul.f32 1.0, %v1208
    %v1210 = vtanh.pop %v1183
    %v1211 = vtanh.pop %v1185
    %v1212 = vmul.f32 %v1203, %v84
    %v1213 = vmul.f32 %v1207, %v85
    %1216 = vrot.lane.b32.xlu0 %v1210, 64
    %v1217 = vpop.permute.xlu0 %1216
    %1218 = vrot.lane.b32.xlu0 %v1211, 64
    %v1219 = vpop.permute.xlu0 %1218
    %v1222 = vmul.f32 %v1203, %v1217
    %v1223 = vmul.f32 %v1207, %v1219
    %1226 = vrot.lane.b32.xlu0 %v1222, 64
    %v1227 = vpop.permute.xlu0 %1226
    %1228 = vrot.lane.b32.xlu0 %v1223, 64
    %v1229 = vpop.permute.xlu0 %1228
    %v1232 = vadd.f32 %v1212, %v1227
    %v1233 = vadd.f32 %v1213, %v1229
    %v1234 = vtanh.pop %v1232
    %v1235 = vtanh.pop %v1233
    %1238 = vrot.lane.b32.xlu0 %v1234, 64
    %v1239 = vpop.permute.xlu0 %1238
    %1240 = vrot.lane.b32.xlu0 %v1235, 64
    %v1241 = vpop.permute.xlu0 %1240
    %v1244 = vmul.f32 %v1205, %v1239
    %v1245 = vmul.f32 %v1209, %v1241
    %1246 = vst.msk [vmem:[#allocation2] sm:$0xff] %vm271, %v1244
    %1247 = vst.msk [vmem:[#allocation2 + $0x8] sm:$0xff] %vm271, %v1245
    %vm1248 = vcmask 1048064
    %1249 = vst.msk [vmem:[#allocation2] sm:$0xff] %vm1248, %v1232
    %1250 = vst.msk [vmem:[#allocation2 + $0x8] sm:$0xff] %vm1248, %v1233
    // Predicated region
    $region54: #{tpu_custom_call.1} parent=1 // pred_check
      %p1251 = pneg %p76
    $region55: #{tpu_custom_call.1} parent=1 // pred_check_branch
      %1253 = sbr.rel (%p1251) target = $region57
    $region56: #{tpu_custom_call.1} parent=1 // pred_region
      %1254 = vst.msk [vmem:[#allocation9] sm:$0xff] %vm271, %v1244
      %1255 = vst.msk [vmem:[#allocation9 + $0x8] sm:$0xff] %vm271, %v1245
      %1256 = vst.msk [vmem:[#allocation9] sm:$0xff] %vm1248, %v1232
      %1257 = vst.msk [vmem:[#allocation9 + $0x8] sm:$0xff] %vm1248, %v1233
    $region57: #{tpu_custom_call.1} parent=1 // pred_fallthru
      _
    %v1258 = vld [vmem:[%s5] sm:$0xff]
    %v1259 = vld [vmem:[%s5 + $0x8] sm:$0xff]
    %v1260 = vld [vmem:[%s5 + $0x10] sm:$0xff]
    %v1261 = vld [vmem:[%s5 + $0x18] sm:$0xff]
    %v1262 = vld [vmem:[%s5 + $0x20] sm:$0xff]
    %v1263 = vld [vmem:[%s5 + $0x28] sm:$0xff]
    %v1264 = vld [vmem:[%s5 + $0x30] sm:$0xff]
    %v1265 = vld [vmem:[%s5 + $0x38] sm:$0xff]
    %v1266 = vld [vmem:[#allocation8] sm:$0x1]
    %v1268 = vlaneseq
    %v1269 = vshrl.u32 %v1268, 7
    %v1270 = vsub.s32 0, %v1269
    %v1271 = vrot.slane %v1266, %v1270
    %v1274 = vsel %vm271, %v1244, 0
    %v1277 = vsel %vm271, %v1245, 0
    %1279 = vmatprep.subr.mxu0 0.0
    %1280 = vmatpush1.msra.mxu0 %v1258
    %1281 = vmatprep.subr.mxu0 0.0
    %1282 = vmatpush1.msra.mxu0 %v1259
    %1283 = vmatprep.subr.mxu0 0.0
    %1284 = vmatpush1.msra.mxu0 %v1260
    %1285 = vmatprep.subr.mxu0 0.0
    %1286 = vmatpush1.msra.mxu0 %v1261
    %1287 = vmatprep.subr.mxu0 0.0
    %1288 = vmatpush1.msra.mxu0 %v1262
    %1289 = vmatprep.subr.mxu0 0.0
    %1290 = vmatpush1.msra.mxu0 %v1263
    %1291 = vmatprep.subr.mxu0 0.0
    %1292 = vmatpush1.msra.mxu0 %v1264
    %1293 = vmatprep.subr.mxu0 0.0
    %1294 = vmatpush1.msra.mxu0 %v1265
    %1295 = vmatprep.subr.mxu0 0.0
    %1296 = vmatpush1.msra.mxu0 0.0
    %1297 = vmatprep.subr.mxu0 0.0
    %1298 = vmatpush1.msra.mxu0 0.0
    %1299 = vmatprep.subr.mxu0 0.0
    %1300 = vmatpush1.msra.mxu0 0.0
    %1301 = vmatprep.subr.mxu0 0.0
    %1302 = vmatpush1.msra.mxu0 0.0
    %1303 = vmatprep.subr.mxu0 0.0
    %1304 = vmatpush1.msra.mxu0 0.0
    %1305 = vmatprep.subr.mxu0 0.0
    %1306 = vmatpush1.msra.mxu0 0.0
    %1307 = vmatprep.subr.mxu0 0.0
    %1308 = vmatpush1.msra.mxu0 0.0
    %1309 = vmatprep.subr.mxu0 0.0
    %1310 = vmatpush1.msra.mxu0 0.0
    %1311 = vmatprep.subr.mxu0 0.0
    %1312 = vmatpush1.msra.mxu0 0.0
    %1313 = vmatprep.subr.mxu0 0.0
    %1314 = vmatpush1.msra.mxu0 0.0
    %1315 = vmatprep.subr.mxu0 0.0
    %1316 = vmatpush1.msra.mxu0 0.0
    %1317 = vmatprep.subr.mxu0 0.0
    %1318 = vmatpush1.msra.mxu0 0.0
    %1319 = vmatprep.subr.mxu0 0.0
    %1320 = vmatpush1.msra.mxu0 0.0
    %1321 = vmatprep.subr.mxu0 0.0
    %1322 = vmatpush1.msra.mxu0 0.0
    %1323 = vmatprep.subr.mxu0 0.0
    %1324 = vmatpush1.msra.mxu0 0.0
    %1325 = vmatprep.subr.mxu0 0.0
    %1326 = vmatpush1.msra.mxu0 0.0
    %1327 = vmatprep.subr.mxu0 0.0
    %1328 = vmatpush1.msra.mxu0 0.0
    %1329 = vmatprep.subr.mxu0 0.0
    %1330 = vmatpush1.msra.mxu0 0.0
    %1331 = vmatprep.subr.mxu0 0.0
    %1332 = vmatpush1.msra.mxu0 0.0
    %1333 = vmatprep.subr.mxu0 0.0
    %1334 = vmatpush1.msra.mxu0 0.0
    %1335 = vmatprep.subr.mxu0 0.0
    %1336 = vmatpush1.msra.mxu0 0.0
    %1337 = vmatprep.subr.mxu0 0.0
    %1338 = vmatpush1.msra.mxu0 0.0
    %1339 = vmatprep.subr.mxu0 0.0
    %1340 = vmatpush1.msra.mxu0 0.0
    %1341 = vmatprep.subr.mxu0 0.0
    %1342 = vmatpush1.msra.mxu0 0.0
    %1343 = vmatprep.mubr.f32.mxu0 0.0
    %1344 = vmatmul.mubr.f32.gmra.mrb[0].mxu0 %v1274
    %v1345 = vpop.f32.mrb[0].mxu0
    %v1346 = vadd.f32 %v1271, %v1345
    %v1347 = vpop.f32.mrb[0].mxu0
    %1348 = vmatprep.mubr.f32.mxu0 0.0
    %1349 = vmatmul.mubr.f32.gmra.mrb[0].mxu0 %v1277
    %v1350 = vpop.f32.mrb[0].mxu0
    %v1351 = vadd.f32 %v1271, %v1350
    %v1352 = vpop.f32.mrb[0].mxu0
    %1353 = vdwg.mxu0
    %v1354 = vld [vmem:[%s7] sm:$0xff]
    %v1355 = vld [vmem:[%s7 + $0x8] sm:$0xff]
    %vm1356 = vcmp.gt.s32.totalorder %v1354, 0
    %vm1357 = vcmp.gt.s32.totalorder %v1355, 0
    %v1358 = vsel %vm1356, %v1346, -1e+30
    %v1359 = vsel %vm1357, %v1351, -1e+30
    %vm1360 = vcmask 64512
    %v1361 = vsel %vm1360, %v1358, -inf
    %1362 = vmax.xlane.f32.xlu0 %v1361
    %v1363 = vpop.xlane.xlu0 %1362
    %v1364 = vsel %vm1360, %v1359, -inf
    %1365 = vmax.xlane.f32.xlu0 %v1364
    %v1366 = vpop.xlane.xlu0 %1365
    %v1367 = vsub.f32 %v1358, %v1363
    %v1368 = vsub.f32 %v1359, %v1366
    %v1369 = vmul.f32 %v1367, 1.442695
    %v1370 = vpow.pop %v1369
    %v1371 = vmul.f32 %v1368, 1.442695
    %v1372 = vpow.pop %v1371
    %v1373 = vsel %vm1360, %v1370, 0.0
    %1374 = vadd.xlane.f32.xlu0 %v1373
    %v1375 = vpop.xlane.xlu0 %1374
    %v1376 = vsel %vm1360, %v1372, 0.0
    %1377 = vadd.xlane.f32.xlu0 %v1376
    %v1378 = vpop.xlane.xlu0 %1377
    %v1379 = vlog2.pop %v1375
    %v1380 = vmul.f32 %v1379, 0.6931472
    %v1381 = vlog2.pop %v1378
    %v1382 = vmul.f32 %v1381, 0.6931472
    %v1383 = vsub.f32 %v1367, %v1380
    %v1384 = vsub.f32 %v1368, %v1382
    %v1385 = vrcp.pop %v1375
    %v1386 = vmul.f32 %v1370, %v1385
    %v1387 = vrcp.pop %v1378
    %v1388 = vmul.f32 %v1372, %v1387
    %v1389 = vld [vmem:[%s8] sm:$0xff]
    %v1390 = vld [vmem:[%s8 + $0x8] sm:$0xff]
    %v1391 = vadd.f32 %v1383, %v1389
    %v1392 = vadd.f32 %v1384, %v1390
    %v1393 = vsel %vm1356, %v1391, -1e+30
    %v1394 = vsel %vm1357, %v1392, -1e+30
    %v1395 = vsel %vm1360, %v1393, -inf
    %1396 = vmax.xlane.f32.xlu0 %v1395
    %v1397 = vpop.xlane.xlu0 %1396
    %v1398 = vsel %vm1360, %v1394, -inf
    %1399 = vmax.xlane.f32.xlu0 %v1398
    %v1400 = vpop.xlane.xlu0 %1399
    %v1401 = vlaneseq
    %v1402 = vand.u32 %v1401, 127
    %vm1403 = vcmp.eq.f32.partialorder %v1393, %v1397
    %vm1404 = vcmp.eq.f32.partialorder %v1394, %v1400
    %v1405 = vsel %vm1403, %v1402, 8
    %v1406 = vsel %vm1404, %v1402, 8
    %v1407 = vsel %vm1360, %v1405, 2147483647
    %v1408 = vand.u32 %v1407, 65535
    %v1409 = vshra.s32 %v1407, 16
    %v1410 = vcvt.s32.f32 %v1408
    %v1411 = vcvt.s32.f32 %v1409
    %1412 = vmin.xlane.f32.xlu0 %v1411
    %v1413 = vpop.xlane.xlu0 %1412
    %vm1414 = vcmp.eq.f32.partialorder %v1411, %v1413
    %v1415 = vsel %vm1414, %v1410, inf
    %1416 = vmin.xlane.f32.xlu0 %v1415
    %v1417 = vpop.xlane.xlu0 %1416
    %v1418 = vcvt.f32.s32 %v1417
    %v1419 = vcvt.f32.s32 %v1413
    %v1420 = vshll.u32 %v1419, 16
    %v1421 = vadd.s32 %v1420, %v1418
    %v1422 = vsel %vm1360, %v1406, 2147483647
    %v1423 = vand.u32 %v1422, 65535
    %v1424 = vshra.s32 %v1422, 16
    %v1425 = vcvt.s32.f32 %v1423
    %v1426 = vcvt.s32.f32 %v1424
    %1427 = vmin.xlane.f32.xlu0 %v1426
    %v1428 = vpop.xlane.xlu0 %1427
    %vm1429 = vcmp.eq.f32.partialorder %v1426, %v1428
    %v1430 = vsel %vm1429, %v1425, inf
    %1431 = vmin.xlane.f32.xlu0 %v1430
    %v1432 = vpop.xlane.xlu0 %1431
    %v1433 = vcvt.f32.s32 %v1432
    %v1434 = vcvt.f32.s32 %v1428
    %v1435 = vshll.u32 %v1434, 16
    %v1436 = vadd.s32 %v1435, %v1433
    %vm1437 = vcmp.eq.s32.totalorder %v1402, %v1421
    %vm1438 = vcmp.eq.s32.totalorder %v1402, %v1436
    %v1439 = vsel %vm1437, 1, 0
    %v1440 = vsel %vm1438, 1, 0
    %v1441 = vcvt.s32.f32 %v1439
    %v1442 = vcvt.s32.f32 %v1440
    %v1443 = vmul.f32 %v1383, %v1441
    %v1444 = vmul.f32 %v1384, %v1442
    %v1445 = vsel %vm1360, %v1443, 0.0
    %1446 = vadd.xlane.f32.xlu0 %v1445
    %v1447 = vpop.xlane.xlu0 %1446
    %v1448 = vsel %vm1360, %v1444, 0.0
    %1449 = vadd.xlane.f32.xlu0 %v1448
    %v1450 = vpop.xlane.xlu0 %1449
    %v1451 = vmul.f32 %v1383, %v1386
    %v1452 = vmul.f32 %v1384, %v1388
    %v1453 = vsel %vm1356, %v1451, 0.0
    %v1454 = vsel %vm1357, %v1452, 0.0
    %v1455 = vsel %vm1360, %v1453, 0.0
    %1456 = vadd.xlane.f32.xlu0 %v1455
    %v1457 = vpop.xlane.xlu0 %1456
    %v1458 = vsel %vm1360, %v1454, 0.0
    %1459 = vadd.xlane.f32.xlu0 %v1458
    %v1460 = vpop.xlane.xlu0 %1459
    %v1461 = vsub.f32 0.0, %v1457
    %v1462 = vsub.f32 0.0, %v1460
    %1463 = vst [vmem:[#allocation10] sm:$0xff] 0.0
    %1464 = vst [vmem:[#allocation10 + $0x8] sm:$0xff] 0.0
    %1465 = vst.msk [vmem:[#allocation10] sm:$0xff] %vm1360, %v1386
    %1466 = vst.msk [vmem:[#allocation10 + $0x8] sm:$0xff] %vm1360, %v1388
    %v1467 = vcvt.s32.f32 %v1421
    %v1468 = vcvt.s32.f32 %v1436
    %1471 = vrot.lane.b32.xlu0 %v1346, 123
    %v1472 = vpop.permute.xlu0 %1471
    %1473 = vrot.lane.b32.xlu0 %v1351, 123
    %v1474 = vpop.permute.xlu0 %1473
    %vm1477 = vcmask 7168
    %v1478 = vsel %vm1477, %v1467, %v1447
    %v1479 = vsel %vm1477, %v1468, %v1450
    %vm1480 = vcmask 15360
    %v1481 = vsel %vm1480, %v1478, %v1461
    %v1482 = vsel %vm1480, %v1479, %v1462
    %vm1483 = vcmask 23552
    %v1484 = vsel %vm1483, %v1481, %v1472
    %v1485 = vsel %vm1483, %v1482, %v1474
    %1488 = vrot.lane.b32.xlu0 %v1484, 8
    %v1489 = vpop.permute.xlu0 %1488
    %1490 = vrot.lane.b32.xlu0 %v1485, 8
    %v1491 = vpop.permute.xlu0 %1490
    %vm1494 = vcmask 97344
    %1495 = vst.msk [vmem:[#allocation10] sm:$0xff] %vm1494, %v1489
    %1496 = vst.msk [vmem:[#allocation10 + $0x8] sm:$0xff] %vm1494, %v1491
    // Predicated region
    $region58: #{tpu_custom_call.1} parent=1 // pred_check
      _
    $region59: #{tpu_custom_call.1} parent=1 // pred_check_branch
      %1498 = sbr.rel (0) target = $region61
    $region60: #{tpu_custom_call.1} parent=1 // pred_region
      %s1500 = ssub.s32 256, 256
      %1501 = vsyncadd [#allocation5], %s1500
      %s1502 = sshll.u32 [#allocation9], 4
      %s1503 = int_to_ptr.vmem [resolvable:$true] %s1502
      %1508 = dma.vmem_to_hbm [thread:$0]  %s1503, 256, %s9, [#allocation5], 128, 128, 8
    $region61: #{tpu_custom_call.1} parent=1 // pred_fallthru
      _
    // Predicated region
    $region62: #{tpu_custom_call.1} parent=1 // pred_check
      _
    $region63: #{tpu_custom_call.1} parent=1 // pred_check_branch
      %1510 = sbr.rel (0) target = $region65
    $region64: #{tpu_custom_call.1} parent=1 // pred_region
      %s1512 = ssub.s32 256, 256
      %1513 = vsyncadd [#allocation11], %s1512
      %s1514 = sshll.u32 [#allocation10], 4
      %s1515 = int_to_ptr.vmem [resolvable:$true] %s1514
      %1520 = dma.vmem_to_hbm [thread:$0]  %s1515, 256, %s10, [#allocation11], 128, 128, 8
    $region65: #{tpu_custom_call.1} parent=1 // pred_fallthru
      _
    // Predicated region
    $region66: #{tpu_custom_call.1} parent=1 // pred_check
      _
    $region67: #{tpu_custom_call.1} parent=1 // pred_check_branch
      %1522 = sbr.rel (0) target = $region69
    $region68: #{tpu_custom_call.1} parent=1 // pred_region
      %1523 = dma.done [#allocation5], 256
    $region69: #{tpu_custom_call.1} parent=1 // pred_fallthru
      _
    // Predicated region
    $region70: #{tpu_custom_call.1} parent=1 // pred_check
      _
    $region71: #{tpu_custom_call.1} parent=1 // pred_check_branch
      %1525 = sbr.rel (0) target = $region73
    $region72: #{tpu_custom_call.1} parent=1 // pred_region
      %1526 = dma.done [#allocation11], 256
    $region73: #{tpu_custom_call.1} parent=1 // pred_fallthru
      _
    %1527 = vsyncpa [#allocation4], 1
    %1528 = vsyncpa [#allocation7], 1
    %1529 = vsyncpa [#allocation5], 1
    %1530 = vsyncpa [#allocation11], 1

</llo_original>
